<compile_context>
chip_gen: v5e
topology: v5e:2x2
jax: 0.10.0
libtpu: 0.0.40
codegen_flags: <defaults>
</compile_context>

<pallas_src>
import jax
import jax.numpy as jnp
import numpy as np
from jax import lax
from jax.experimental import pallas as pl
from jax.experimental.pallas import tpu as pltpu


def make_lstm_tagger_kernel(B_pad, T, H):
    B2 = 2 * B_pad        # fused fwd+bwd row block per step
    G = 4 * H             # per-direction gate width (i,f,g,o)

    def kernel(x_ref, wih_ref, whh_ref, win_ref, wout_ref, bout_ref,
               out_ref, gx_ref, hout_ref):
        # ---- (1) hoisted input projection: ONE [T*2*Bp, 2E+2] x [2E+2, 4H] matmul.
        #          Both directions' W_ih and both biases are folded into wih_ref via the
        #          block-diagonal x layout + trailing one-hot columns.
        gx_ref[...] = jnp.dot(x_ref[...], wih_ref[...],
                              preferred_element_type=jnp.float32)

        # ---- (2) loop-invariant reads (exactly once).
        whh = whh_ref[...]                    # [2H, 4H] stacked [Whh_f ; Whh_b]
        win = win_ref[...]                    # [2Bp, 2H] int32 validity windows
        start = win[:, 0:H]                   # step valid iff start <= s < stop
        stop = win[:, H:2 * H]

        # direction placement mask for the block-diagonal carry:
        # fwd rows (0:Bp) live in lanes 0:H, bwd rows (Bp:2Bp) in lanes H:2H.
        sub = lax.broadcasted_iota(jnp.int32, (B2, 2 * H), 0)
        lane = lax.broadcasted_iota(jnp.int32, (B2, 2 * H), 1)
        dir_mask = jnp.where((sub < B_pad) == (lane < H), 1.0, 0.0)

        zeros = jnp.zeros((B2, H), jnp.float32)

        # ---- (3) fused bidirectional recurrence, fully unrolled (T static).
        #          One MXU push + one full-width sigmoid + tanh per step.
        def step(s, carry):
            h, c = carry                                         # [2Bp, H] each
            rg = pl.multiple_of(s * B2, B2)                      # fused gx block
            rf = pl.multiple_of(s * B_pad, B_pad)                # forward output rows
            rb = pl.multiple_of((T - 1 - s) * B_pad, B_pad)      # backward output rows

            # block-diagonal carry: single [2Bp,2H]x[2H,4H] dot covers both directions.
            h_wide = jnp.concatenate([h, h], axis=-1) * dir_mask
            gates = gx_ref[pl.ds(rg, B2), :] + jnp.dot(
                h_wide, whh, preferred_element_type=jnp.float32)  # [2Bp, 4H]

            # full-vreg-width nonlinearities, then lane-slice i/f/g/o (PyTorch order).
            sig = jax.nn.sigmoid(gates)
            tnh = jnp.tanh(gates)
            i = sig[:, 0:H]
            f = sig[:, H:2 * H]
            g = tnh[:, 2 * H:3 * H]
            o = sig[:, 3 * H:4 * H]

            c_new = f * c + i * g
            h_new = o * jnp.tanh(c_new)

            # packed-sequence semantics: state only advances on valid (unpadded) steps.
            m = (s >= start) & (s < stop)                        # [2Bp, H] bool
            h = jnp.where(m, h_new, h)
            c = jnp.where(m, c_new, c)

            # per-token outputs; zeros at padded positions (== pad_packed_sequence).
            h_emit = jnp.where(m, h_new, 0.0)
            hout_ref[pl.ds(rf, B_pad), 0:H] = h_emit[0:B_pad, :]
            hout_ref[pl.ds(rb, B_pad), H:2 * H] = h_emit[B_pad:B2, :]
            return h, c

        lax.fori_loop(0, T, step, (zeros, zeros), unroll=True)

        # ---- (4) hidden2tag as ONE [T*Bp, 2H] x [2H, TAGS] matmul over all tokens.
        out_ref[...] = jnp.dot(hout_ref[...], wout_ref[...],
                               preferred_element_type=jnp.float32) + bout_ref[...]

    return kernel


def lstm_tagger_forward(sentence, params, *, E, H, TAGS):
    B, T = sentence.shape
    B_pad = max(8, ((B + 7) // 8) * 8)   # pad batch to a full sublane tile

    # ---- glue in plain JAX: embedding gather, batch padding, block-diagonal x layout.
    x = params["emb"][sentence]                                  # [B, T, E]
    x = jnp.transpose(x, (1, 0, 2)).astype(jnp.float32)          # [T, B, E] time-major
    x = jnp.pad(x, ((0, 0), (0, B_pad - B), (0, 0)))             # [T, Bp, E]

    zE = jnp.zeros((T, B_pad, E), jnp.float32)
    one = jnp.ones((T, B_pad, 1), jnp.float32)
    zro = jnp.zeros((T, B_pad, 1), jnp.float32)
    x_f = jnp.concatenate([x, zE, one, zro], axis=-1)            # fwd rows [x_t|0|1 0]
    x_b = jnp.concatenate([zE, x[::-1], zro, one], axis=-1)      # bwd rows [0|x_t'|0 1]
    x_comb = jnp.concatenate([x_f, x_b], axis=1)                 # [T, 2Bp, 2E+2]
    x_comb = x_comb.reshape(T * 2 * B_pad, 2 * E + 2)

    # fused projection weight: [Wih_f ; Wih_b ; b_f ; b_b] -> [2E+2, 4H]
    wih_aug = jnp.concatenate([params["wih_f"], params["wih_b"],
                               params["b_f"], params["b_b"]], axis=0)
    # stacked recurrent weight for the block-diagonal dot: [2H, 4H]
    whh_stack = jnp.concatenate([params["whh_f"], params["whh_b"]], axis=0)

    # per-row validity windows [start, stop): fwd = [0, len), bwd = [T-len, T).
    lengths = (sentence != 0).sum(axis=1).astype(jnp.int32)
    lengths = jnp.pad(lengths, (0, B_pad - B))                   # padded rows -> len 0
    start = jnp.concatenate([jnp.zeros((B_pad,), jnp.int32), T - lengths])
    stop = jnp.concatenate([lengths, jnp.full((B_pad,), T, jnp.int32)])
    win_comb = jnp.concatenate(
        [jnp.broadcast_to(start[:, None], (2 * B_pad, H)),
         jnp.broadcast_to(stop[:, None], (2 * B_pad, H))], axis=-1).astype(jnp.int32)

    kernel = make_lstm_tagger_kernel(B_pad, T, H)
    vmem = pl.BlockSpec(memory_space=pltpu.MemorySpace.VMEM)

    out_flat = pl.pallas_call(
        kernel,
        out_shape=jax.ShapeDtypeStruct((T * B_pad, TAGS), jnp.float32),
        in_specs=[vmem] * 6,
        out_specs=vmem,
        scratch_shapes=[
            pltpu.VMEM((T * 2 * B_pad, 4 * H), jnp.float32),   # precomputed input gates
            pltpu.VMEM((T * B_pad, 2 * H), jnp.float32),       # per-token [h_f | h_b]
        ],
    )(x_comb, wih_aug, whh_stack, win_comb, params["wout"], params["bout"])

    out = out_flat.reshape(T, B_pad, TAGS)[:, :B, :]             # drop batch padding
    return jnp.transpose(out, (1, 0, 2))                         # [B, T, TAGS]


def reference_forward(sentence, params, *, E, H, TAGS):
    """Pure-JAX reference with LSTMTagger semantics, for validation."""
    B, T = sentence.shape
    x = jnp.transpose(params["emb"][sentence], (1, 0, 2)).astype(jnp.float32)  # [T,B,E]
    lengths = (sentence != 0).sum(axis=1)
    mask = (jnp.arange(T)[:, None] < lengths[None, :]).astype(jnp.float32)[:, :, None]

    def run(order, wih, whh, b):
        h = jnp.zeros((B, H), jnp.float32)
        c = jnp.zeros((B, H), jnp.float32)
        outs = [None] * T
        for t in order:
            gates = x[t] @ wih + h @ whh + b
            i = jax.nn.sigmoid(gates[:, :H])
            f = jax.nn.sigmoid(gates[:, H:2 * H])
            g = jnp.tanh(gates[:, 2 * H:3 * H])
            o = jax.nn.sigmoid(gates[:, 3 * H:])
            c_new = f * c + i * g
            h_new = o * jnp.tanh(c_new)
            m = mask[t]
            h = m * h_new + (1 - m) * h
            c = m * c_new + (1 - m) * c
            outs[t] = m * h_new                  # padded positions -> 0
        return jnp.stack(outs, axis=0)           # [T, B, H]

    hf = run(range(T), params["wih_f"], params["whh_f"], params["b_f"])
    hb = run(range(T - 1, -1, -1), params["wih_b"], params["whh_b"], params["b_b"])
    lstm_out = jnp.concatenate([hf, hb], axis=-1)                # [T, B, 2H]
    tag = lstm_out @ params["wout"] + params["bout"]             # [T, B, TAGS]
    return jnp.transpose(tag, (1, 0, 2))                         # [B, T, TAGS]


if __name__ == "__main__":
    # small shapes consistent with the module
    V, E, H, TAGS = 16, 32, 32, 8   # vocab, words_embedding_dim, words_hidden_dim, tagset_size
    B, T = 2, 8

    key = jax.random.PRNGKey(0)
    ks = jax.random.split(key, 10)
    s = 0.1
    params = {
        "emb":   jax.random.normal(ks[0], (V, E), jnp.float32) * s,
        # LSTM weights stored pre-transposed: W_ih [E, 4H], W_hh [H, 4H],
        # bias [1, 4H] (b_ih + b_hh folded).
        "wih_f": jax.random.normal(ks[1], (E, 4 * H), jnp.float32) * s,
        "whh_f": jax.random.normal(ks[2], (H, 4 * H), jnp.float32) * s,
        "b_f":   jax.random.normal(ks[3], (1, 4 * H), jnp.float32) * s,
        "wih_b": jax.random.normal(ks[4], (E, 4 * H), jnp.float32) * s,
        "whh_b": jax.random.normal(ks[5], (H, 4 * H), jnp.float32) * s,
        "b_b":   jax.random.normal(ks[6], (1, 4 * H), jnp.float32) * s,
        # hidden2tag: [2H, TAGS] (transposed vs PyTorch Linear), bias [1, TAGS]
        "wout":  jax.random.normal(ks[7], (2 * H, TAGS), jnp.float32) * s,
        "bout":  jax.random.normal(ks[8], (1, TAGS), jnp.float32) * s,
    }

    # sentence: word ids in [1, V), padded with 0; variable lengths (8 and 5)
    sentence = jax.random.randint(ks[9], (B, T), 1, V, dtype=jnp.int32)
    sentence = sentence.at[1, 5:].set(0)

    out = lstm_tagger_forward(sentence, params, E=E, H=H, TAGS=TAGS)
    out = jax.block_until_ready(out)

    ref = jax.block_until_ready(reference_forward(sentence, params, E=E, H=H, TAGS=TAGS))
    assert out.shape == (B, T, TAGS)
    np.testing.assert_allclose(np.asarray(out), np.asarray(ref), atol=1e-3, rtol=1e-3)

    print("KERNEL_OK")
</pallas_src>

<mosaic_0001>
module attributes {stable_mosaic.version = 11 : i64} {
  func.func @kernel(%arg0: memref<128x66xf32, #tpu.memory_space<vmem>>, %arg1: memref<66x128xf32, #tpu.memory_space<vmem>>, %arg2: memref<64x128xf32, #tpu.memory_space<vmem>>, %arg3: memref<16x64xi32, #tpu.memory_space<vmem>>, %arg4: memref<64x8xf32, #tpu.memory_space<vmem>>, %arg5: memref<1x8xf32, #tpu.memory_space<vmem>>, %arg6: memref<64x8xf32, #tpu.memory_space<vmem>>, %arg7: memref<128x128xf32, #tpu.memory_space<vmem>>, %arg8: memref<64x64xf32, #tpu.memory_space<vmem>>) attributes {dimension_semantics = [], scalar_prefetch = 0 : i64, scratch_operands = 2 : i64, tpu.core_type = #tpu.core_type<tc>} {
    %c0 = arith.constant 0 : index
    %c0_0 = arith.constant 0 : index
    %0 = vector.load %arg0[%c0, %c0_0] : memref<128x66xf32, #tpu.memory_space<vmem>>, vector<128x66xf32>
    %c0_1 = arith.constant 0 : index
    %c0_2 = arith.constant 0 : index
    %1 = vector.load %arg1[%c0_1, %c0_2] : memref<66x128xf32, #tpu.memory_space<vmem>>, vector<66x128xf32>
    %cst = arith.constant dense<0.000000e+00> : vector<128x128xf32>
    %2 = tpu.matmul %0, %1, %cst {dimension_numbers = #tpu.dot_dimension_numbers<[1], [0], [0], [1], [0, 0, 1, 1], [], []>} : vector<128x66xf32>, vector<66x128xf32>, vector<128x128xf32> -> vector<128x128xf32>
    %c0_3 = arith.constant 0 : index
    %c0_4 = arith.constant 0 : index
    %3 = vector.load %arg7[%c0_3, %c0_4] : memref<128x128xf32, #tpu.memory_space<vmem>>, vector<128x128xf32>
    tpu.vector_store %arg7[%c0_3, %c0_4], %2 {strides = array<i32>} : memref<128x128xf32, #tpu.memory_space<vmem>>, vector<128x128xf32>,
    %c0_5 = arith.constant 0 : index
    %c0_6 = arith.constant 0 : index
    %4 = vector.load %arg2[%c0_5, %c0_6] : memref<64x128xf32, #tpu.memory_space<vmem>>, vector<64x128xf32>
    %c0_7 = arith.constant 0 : index
    %c0_8 = arith.constant 0 : index
    %5 = vector.load %arg3[%c0_7, %c0_8] : memref<16x64xi32, #tpu.memory_space<vmem>>, vector<16x64xi32>
    %6 = vector.extract_strided_slice %5 {offsets = [0, 0], sizes = [16, 32], strides = [1, 1]} : vector<16x64xi32> to vector<16x32xi32>
    %7 = vector.extract_strided_slice %5 {offsets = [0, 32], sizes = [16, 32], strides = [1, 1]} : vector<16x64xi32> to vector<16x32xi32>
    %8 = tpu.iota {dimensions = array<i32: 0>} : vector<16x64xi32>
    %9 = tpu.iota {dimensions = array<i32: 1>} : vector<16x64xi32>
    %c8_i32 = arith.constant 8 : i32
    %10 = vector.broadcast %c8_i32 : i32 to vector<16x64xi32>
    %11 = arith.cmpi slt, %8, %10 : vector<16x64xi32>
    %c32_i32 = arith.constant 32 : i32
    %12 = vector.broadcast %c32_i32 : i32 to vector<16x64xi32>
    %13 = arith.cmpi slt, %9, %12 : vector<16x64xi32>
    %14 = arith.xori %11, %13 : vector<16x64xi1>
    %cst_9 = arith.constant dense<true> : vector<16x64xi1>
    %15 = arith.xori %14, %cst_9 : vector<16x64xi1>
    %cst_10 = arith.constant 1.000000e+00 : f32
    %cst_11 = arith.constant 0.000000e+00 : f32
    %16 = vector.broadcast %cst_10 : f32 to vector<16x64xf32>
    %17 = vector.broadcast %cst_11 : f32 to vector<16x64xf32>
    %18 = arith.select %15, %16, %17 : vector<16x64xi1>, vector<16x64xf32>
    %cst_12 = arith.constant 0.000000e+00 : f32
    %19 = vector.broadcast %cst_12 : f32 to vector<16x32xf32>
    %c0_i32 = arith.constant 0 : i32
    %c16_i32 = arith.constant 16 : i32
    %20 = arith.muli %c0_i32, %c16_i32 : i32
    %21 = tpu.assume_multiple %20, 16 : i32
    %c8_i32_13 = arith.constant 8 : i32
    %22 = arith.muli %c0_i32, %c8_i32_13 : i32
    %23 = tpu.assume_multiple %22, 8 : i32
    %c7_i32 = arith.constant 7 : i32
    %24 = arith.subi %c7_i32, %c0_i32 : i32
    %c8_i32_14 = arith.constant 8 : i32
    %25 = arith.muli %24, %c8_i32_14 : i32
    %26 = tpu.assume_multiple %25, 8 : i32
    %27 = tpu.concatenate %19, %19 in 1 : vector<16x32xf32>, vector<16x32xf32> -> vector<16x64xf32>
    %28 = arith.mulf %27, %18 : vector<16x64xf32>
    %29 = arith.index_cast %21 : i32 to index
    %c0_15 = arith.constant 0 : index
    %30 = vector.load %arg7[%29, %c0_15] : memref<128x128xf32, #tpu.memory_space<vmem>>, vector<16x128xf32>
    %cst_16 = arith.constant dense<0.000000e+00> : vector<16x128xf32>
    %31 = tpu.matmul %28, %4, %cst_16 {dimension_numbers = #tpu.dot_dimension_numbers<[1], [0], [0], [1], [0, 0, 1, 1], [], []>} : vector<16x64xf32>, vector<64x128xf32>, vector<16x128xf32> -> vector<16x128xf32>
    %32 = arith.addf %30, %31 : vector<16x128xf32>
    %33 = arith.negf %32 : vector<16x128xf32>
    %34 = math.exp %33 : vector<16x128xf32>
    %cst_17 = arith.constant 1.000000e+00 : f32
    %35 = vector.broadcast %cst_17 : f32 to vector<16x128xf32>
    %36 = arith.addf %35, %34 : vector<16x128xf32>
    %37 = arith.divf %35, %36 : vector<16x128xf32>
    %38 = math.tanh %32 : vector<16x128xf32>
    %39 = vector.extract_strided_slice %37 {offsets = [0, 0], sizes = [16, 32], strides = [1, 1]} : vector<16x128xf32> to vector<16x32xf32>
    %40 = vector.extract_strided_slice %37 {offsets = [0, 32], sizes = [16, 32], strides = [1, 1]} : vector<16x128xf32> to vector<16x32xf32>
    %41 = vector.extract_strided_slice %38 {offsets = [0, 64], sizes = [16, 32], strides = [1, 1]} : vector<16x128xf32> to vector<16x32xf32>
    %42 = vector.extract_strided_slice %37 {offsets = [0, 96], sizes = [16, 32], strides = [1, 1]} : vector<16x128xf32> to vector<16x32xf32>
    %43 = arith.mulf %40, %19 : vector<16x32xf32>
    %44 = arith.mulf %39, %41 : vector<16x32xf32>
    %45 = arith.addf %43, %44 : vector<16x32xf32>
    %46 = math.tanh %45 : vector<16x32xf32>
    %47 = arith.mulf %42, %46 : vector<16x32xf32>
    %48 = vector.broadcast %c0_i32 : i32 to vector<16x32xi32>
    %49 = arith.cmpi sge, %48, %6 : vector<16x32xi32>
    %50 = vector.broadcast %c0_i32 : i32 to vector<16x32xi32>
    %51 = arith.cmpi slt, %50, %7 : vector<16x32xi32>
    %52 = arith.andi %49, %51 : vector<16x32xi1>
    %53 = arith.select %52, %47, %19 : vector<16x32xi1>, vector<16x32xf32>
    %54 = arith.select %52, %45, %19 : vector<16x32xi1>, vector<16x32xf32>
    %cst_18 = arith.constant 0.000000e+00 : f32
    %55 = vector.broadcast %cst_18 : f32 to vector<16x32xf32>
    %56 = arith.select %52, %47, %55 : vector<16x32xi1>, vector<16x32xf32>
    %57 = vector.extract_strided_slice %56 {offsets = [0, 0], sizes = [8, 32], strides = [1, 1]} : vector<16x32xf32> to vector<8x32xf32>
    %58 = arith.index_cast %23 : i32 to index
    %c0_19 = arith.constant 0 : index
    %59 = vector.load %arg8[%58, %c0_19] : memref<64x64xf32, #tpu.memory_space<vmem>>, vector<8x32xf32>
    tpu.vector_store %arg8[%58, %c0_19], %57 {strides = array<i32>} : memref<64x64xf32, #tpu.memory_space<vmem>>, vector<8x32xf32>,
    %60 = vector.extract_strided_slice %56 {offsets = [8, 0], sizes = [8, 32], strides = [1, 1]} : vector<16x32xf32> to vector<8x32xf32>
    %61 = arith.index_cast %26 : i32 to index
    %c32 = arith.constant 32 : index
    %62 = vector.load %arg8[%61, %c32] : memref<64x64xf32, #tpu.memory_space<vmem>>, vector<8x32xf32>
    tpu.vector_store %arg8[%61, %c32], %60 {strides = array<i32>} : memref<64x64xf32, #tpu.memory_space<vmem>>, vector<8x32xf32>,
    %c1_i32 = arith.constant 1 : i32
    %c16_i32_20 = arith.constant 16 : i32
    %63 = arith.muli %c1_i32, %c16_i32_20 : i32
    %64 = tpu.assume_multiple %63, 16 : i32
    %c8_i32_21 = arith.constant 8 : i32
    %65 = arith.muli %c1_i32, %c8_i32_21 : i32
    %66 = tpu.assume_multiple %65, 8 : i32
    %c7_i32_22 = arith.constant 7 : i32
    %67 = arith.subi %c7_i32_22, %c1_i32 : i32
    %c8_i32_23 = arith.constant 8 : i32
    %68 = arith.muli %67, %c8_i32_23 : i32
    %69 = tpu.assume_multiple %68, 8 : i32
    %70 = tpu.concatenate %53, %53 in 1 : vector<16x32xf32>, vector<16x32xf32> -> vector<16x64xf32>
    %71 = arith.mulf %70, %18 : vector<16x64xf32>
    %72 = arith.index_cast %64 : i32 to index
    %c0_24 = arith.constant 0 : index
    %73 = vector.load %arg7[%72, %c0_24] : memref<128x128xf32, #tpu.memory_space<vmem>>, vector<16x128xf32>
    %cst_25 = arith.constant dense<0.000000e+00> : vector<16x128xf32>
    %74 = tpu.matmul %71, %4, %cst_25 {dimension_numbers = #tpu.dot_dimension_numbers<[1], [0], [0], [1], [0, 0, 1, 1], [], []>} : vector<16x64xf32>, vector<64x128xf32>, vector<16x128xf32> -> vector<16x128xf32>
    %75 = arith.addf %73, %74 : vector<16x128xf32>
    %76 = arith.negf %75 : vector<16x128xf32>
    %77 = math.exp %76 : vector<16x128xf32>
    %cst_26 = arith.constant 1.000000e+00 : f32
    %78 = vector.broadcast %cst_26 : f32 to vector<16x128xf32>
    %79 = arith.addf %78, %77 : vector<16x128xf32>
    %80 = arith.divf %78, %79 : vector<16x128xf32>
    %81 = math.tanh %75 : vector<16x128xf32>
    %82 = vector.extract_strided_slice %80 {offsets = [0, 0], sizes = [16, 32], strides = [1, 1]} : vector<16x128xf32> to vector<16x32xf32>
    %83 = vector.extract_strided_slice %80 {offsets = [0, 32], sizes = [16, 32], strides = [1, 1]} : vector<16x128xf32> to vector<16x32xf32>
    %84 = vector.extract_strided_slice %81 {offsets = [0, 64], sizes = [16, 32], strides = [1, 1]} : vector<16x128xf32> to vector<16x32xf32>
    %85 = vector.extract_strided_slice %80 {offsets = [0, 96], sizes = [16, 32], strides = [1, 1]} : vector<16x128xf32> to vector<16x32xf32>
    %86 = arith.mulf %83, %54 : vector<16x32xf32>
    %87 = arith.mulf %82, %84 : vector<16x32xf32>
    %88 = arith.addf %86, %87 : vector<16x32xf32>
    %89 = math.tanh %88 : vector<16x32xf32>
    %90 = arith.mulf %85, %89 : vector<16x32xf32>
    %91 = vector.broadcast %c1_i32 : i32 to vector<16x32xi32>
    %92 = arith.cmpi sge, %91, %6 : vector<16x32xi32>
    %93 = vector.broadcast %c1_i32 : i32 to vector<16x32xi32>
    %94 = arith.cmpi slt, %93, %7 : vector<16x32xi32>
    %95 = arith.andi %92, %94 : vector<16x32xi1>
    %96 = arith.select %95, %90, %53 : vector<16x32xi1>, vector<16x32xf32>
    %97 = arith.select %95, %88, %54 : vector<16x32xi1>, vector<16x32xf32>
    %cst_27 = arith.constant 0.000000e+00 : f32
    %98 = vector.broadcast %cst_27 : f32 to vector<16x32xf32>
    %99 = arith.select %95, %90, %98 : vector<16x32xi1>, vector<16x32xf32>
    %100 = vector.extract_strided_slice %99 {offsets = [0, 0], sizes = [8, 32], strides = [1, 1]} : vector<16x32xf32> to vector<8x32xf32>
    %101 = arith.index_cast %66 : i32 to index
    %c0_28 = arith.constant 0 : index
    %102 = vector.load %arg8[%101, %c0_28] : memref<64x64xf32, #tpu.memory_space<vmem>>, vector<8x32xf32>
    tpu.vector_store %arg8[%101, %c0_28], %100 {strides = array<i32>} : memref<64x64xf32, #tpu.memory_space<vmem>>, vector<8x32xf32>,
    %103 = vector.extract_strided_slice %99 {offsets = [8, 0], sizes = [8, 32], strides = [1, 1]} : vector<16x32xf32> to vector<8x32xf32>
    %104 = arith.index_cast %69 : i32 to index
    %c32_29 = arith.constant 32 : index
    %105 = vector.load %arg8[%104, %c32_29] : memref<64x64xf32, #tpu.memory_space<vmem>>, vector<8x32xf32>
    tpu.vector_store %arg8[%104, %c32_29], %103 {strides = array<i32>} : memref<64x64xf32, #tpu.memory_space<vmem>>, vector<8x32xf32>,
    %c2_i32 = arith.constant 2 : i32
    %c16_i32_30 = arith.constant 16 : i32
    %106 = arith.muli %c2_i32, %c16_i32_30 : i32
    %107 = tpu.assume_multiple %106, 16 : i32
    %c8_i32_31 = arith.constant 8 : i32
    %108 = arith.muli %c2_i32, %c8_i32_31 : i32
    %109 = tpu.assume_multiple %108, 8 : i32
    %c7_i32_32 = arith.constant 7 : i32
    %110 = arith.subi %c7_i32_32, %c2_i32 : i32
    %c8_i32_33 = arith.constant 8 : i32
    %111 = arith.muli %110, %c8_i32_33 : i32
    %112 = tpu.assume_multiple %111, 8 : i32
    %113 = tpu.concatenate %96, %96 in 1 : vector<16x32xf32>, vector<16x32xf32> -> vector<16x64xf32>
    %114 = arith.mulf %113, %18 : vector<16x64xf32>
    %115 = arith.index_cast %107 : i32 to index
    %c0_34 = arith.constant 0 : index
    %116 = vector.load %arg7[%115, %c0_34] : memref<128x128xf32, #tpu.memory_space<vmem>>, vector<16x128xf32>
    %cst_35 = arith.constant dense<0.000000e+00> : vector<16x128xf32>
    %117 = tpu.matmul %114, %4, %cst_35 {dimension_numbers = #tpu.dot_dimension_numbers<[1], [0], [0], [1], [0, 0, 1, 1], [], []>} : vector<16x64xf32>, vector<64x128xf32>, vector<16x128xf32> -> vector<16x128xf32>
    %118 = arith.addf %116, %117 : vector<16x128xf32>
    %119 = arith.negf %118 : vector<16x128xf32>
    %120 = math.exp %119 : vector<16x128xf32>
    %cst_36 = arith.constant 1.000000e+00 : f32
    %121 = vector.broadcast %cst_36 : f32 to vector<16x128xf32>
    %122 = arith.addf %121, %120 : vector<16x128xf32>
    %123 = arith.divf %121, %122 : vector<16x128xf32>
    %124 = math.tanh %118 : vector<16x128xf32>
    %125 = vector.extract_strided_slice %123 {offsets = [0, 0], sizes = [16, 32], strides = [1, 1]} : vector<16x128xf32> to vector<16x32xf32>
    %126 = vector.extract_strided_slice %123 {offsets = [0, 32], sizes = [16, 32], strides = [1, 1]} : vector<16x128xf32> to vector<16x32xf32>
    %127 = vector.extract_strided_slice %124 {offsets = [0, 64], sizes = [16, 32], strides = [1, 1]} : vector<16x128xf32> to vector<16x32xf32>
    %128 = vector.extract_strided_slice %123 {offsets = [0, 96], sizes = [16, 32], strides = [1, 1]} : vector<16x128xf32> to vector<16x32xf32>
    %129 = arith.mulf %126, %97 : vector<16x32xf32>
    %130 = arith.mulf %125, %127 : vector<16x32xf32>
    %131 = arith.addf %129, %130 : vector<16x32xf32>
    %132 = math.tanh %131 : vector<16x32xf32>
    %133 = arith.mulf %128, %132 : vector<16x32xf32>
    %134 = vector.broadcast %c2_i32 : i32 to vector<16x32xi32>
    %135 = arith.cmpi sge, %134, %6 : vector<16x32xi32>
    %136 = vector.broadcast %c2_i32 : i32 to vector<16x32xi32>
    %137 = arith.cmpi slt, %136, %7 : vector<16x32xi32>
    %138 = arith.andi %135, %137 : vector<16x32xi1>
    %139 = arith.select %138, %133, %96 : vector<16x32xi1>, vector<16x32xf32>
    %140 = arith.select %138, %131, %97 : vector<16x32xi1>, vector<16x32xf32>
    %cst_37 = arith.constant 0.000000e+00 : f32
    %141 = vector.broadcast %cst_37 : f32 to vector<16x32xf32>
    %142 = arith.select %138, %133, %141 : vector<16x32xi1>, vector<16x32xf32>
    %143 = vector.extract_strided_slice %142 {offsets = [0, 0], sizes = [8, 32], strides = [1, 1]} : vector<16x32xf32> to vector<8x32xf32>
    %144 = arith.index_cast %109 : i32 to index
    %c0_38 = arith.constant 0 : index
    %145 = vector.load %arg8[%144, %c0_38] : memref<64x64xf32, #tpu.memory_space<vmem>>, vector<8x32xf32>
    tpu.vector_store %arg8[%144, %c0_38], %143 {strides = array<i32>} : memref<64x64xf32, #tpu.memory_space<vmem>>, vector<8x32xf32>,
    %146 = vector.extract_strided_slice %142 {offsets = [8, 0], sizes = [8, 32], strides = [1, 1]} : vector<16x32xf32> to vector<8x32xf32>
    %147 = arith.index_cast %112 : i32 to index
    %c32_39 = arith.constant 32 : index
    %148 = vector.load %arg8[%147, %c32_39] : memref<64x64xf32, #tpu.memory_space<vmem>>, vector<8x32xf32>
    tpu.vector_store %arg8[%147, %c32_39], %146 {strides = array<i32>} : memref<64x64xf32, #tpu.memory_space<vmem>>, vector<8x32xf32>,
    %c3_i32 = arith.constant 3 : i32
    %c16_i32_40 = arith.constant 16 : i32
    %149 = arith.muli %c3_i32, %c16_i32_40 : i32
    %150 = tpu.assume_multiple %149, 16 : i32
    %c8_i32_41 = arith.constant 8 : i32
    %151 = arith.muli %c3_i32, %c8_i32_41 : i32
    %152 = tpu.assume_multiple %151, 8 : i32
    %c7_i32_42 = arith.constant 7 : i32
    %153 = arith.subi %c7_i32_42, %c3_i32 : i32
    %c8_i32_43 = arith.constant 8 : i32
    %154 = arith.muli %153, %c8_i32_43 : i32
    %155 = tpu.assume_multiple %154, 8 : i32
    %156 = tpu.concatenate %139, %139 in 1 : vector<16x32xf32>, vector<16x32xf32> -> vector<16x64xf32>
    %157 = arith.mulf %156, %18 : vector<16x64xf32>
    %158 = arith.index_cast %150 : i32 to index
    %c0_44 = arith.constant 0 : index
    %159 = vector.load %arg7[%158, %c0_44] : memref<128x128xf32, #tpu.memory_space<vmem>>, vector<16x128xf32>
    %cst_45 = arith.constant dense<0.000000e+00> : vector<16x128xf32>
    %160 = tpu.matmul %157, %4, %cst_45 {dimension_numbers = #tpu.dot_dimension_numbers<[1], [0], [0], [1], [0, 0, 1, 1], [], []>} : vector<16x64xf32>, vector<64x128xf32>, vector<16x128xf32> -> vector<16x128xf32>
    %161 = arith.addf %159, %160 : vector<16x128xf32>
    %162 = arith.negf %161 : vector<16x128xf32>
    %163 = math.exp %162 : vector<16x128xf32>
    %cst_46 = arith.constant 1.000000e+00 : f32
    %164 = vector.broadcast %cst_46 : f32 to vector<16x128xf32>
    %165 = arith.addf %164, %163 : vector<16x128xf32>
    %166 = arith.divf %164, %165 : vector<16x128xf32>
    %167 = math.tanh %161 : vector<16x128xf32>
    %168 = vector.extract_strided_slice %166 {offsets = [0, 0], sizes = [16, 32], strides = [1, 1]} : vector<16x128xf32> to vector<16x32xf32>
    %169 = vector.extract_strided_slice %166 {offsets = [0, 32], sizes = [16, 32], strides = [1, 1]} : vector<16x128xf32> to vector<16x32xf32>
    %170 = vector.extract_strided_slice %167 {offsets = [0, 64], sizes = [16, 32], strides = [1, 1]} : vector<16x128xf32> to vector<16x32xf32>
    %171 = vector.extract_strided_slice %166 {offsets = [0, 96], sizes = [16, 32], strides = [1, 1]} : vector<16x128xf32> to vector<16x32xf32>
    %172 = arith.mulf %169, %140 : vector<16x32xf32>
    %173 = arith.mulf %168, %170 : vector<16x32xf32>
    %174 = arith.addf %172, %173 : vector<16x32xf32>
    %175 = math.tanh %174 : vector<16x32xf32>
    %176 = arith.mulf %171, %175 : vector<16x32xf32>
    %177 = vector.broadcast %c3_i32 : i32 to vector<16x32xi32>
    %178 = arith.cmpi sge, %177, %6 : vector<16x32xi32>
    %179 = vector.broadcast %c3_i32 : i32 to vector<16x32xi32>
    %180 = arith.cmpi slt, %179, %7 : vector<16x32xi32>
    %181 = arith.andi %178, %180 : vector<16x32xi1>
    %182 = arith.select %181, %176, %139 : vector<16x32xi1>, vector<16x32xf32>
    %183 = arith.select %181, %174, %140 : vector<16x32xi1>, vector<16x32xf32>
    %cst_47 = arith.constant 0.000000e+00 : f32
    %184 = vector.broadcast %cst_47 : f32 to vector<16x32xf32>
    %185 = arith.select %181, %176, %184 : vector<16x32xi1>, vector<16x32xf32>
    %186 = vector.extract_strided_slice %185 {offsets = [0, 0], sizes = [8, 32], strides = [1, 1]} : vector<16x32xf32> to vector<8x32xf32>
    %187 = arith.index_cast %152 : i32 to index
    %c0_48 = arith.constant 0 : index
    %188 = vector.load %arg8[%187, %c0_48] : memref<64x64xf32, #tpu.memory_space<vmem>>, vector<8x32xf32>
    tpu.vector_store %arg8[%187, %c0_48], %186 {strides = array<i32>} : memref<64x64xf32, #tpu.memory_space<vmem>>, vector<8x32xf32>,
    %189 = vector.extract_strided_slice %185 {offsets = [8, 0], sizes = [8, 32], strides = [1, 1]} : vector<16x32xf32> to vector<8x32xf32>
    %190 = arith.index_cast %155 : i32 to index
    %c32_49 = arith.constant 32 : index
    %191 = vector.load %arg8[%190, %c32_49] : memref<64x64xf32, #tpu.memory_space<vmem>>, vector<8x32xf32>
    tpu.vector_store %arg8[%190, %c32_49], %189 {strides = array<i32>} : memref<64x64xf32, #tpu.memory_space<vmem>>, vector<8x32xf32>,
    %c4_i32 = arith.constant 4 : i32
    %c16_i32_50 = arith.constant 16 : i32
    %192 = arith.muli %c4_i32, %c16_i32_50 : i32
    %193 = tpu.assume_multiple %192, 16 : i32
    %c8_i32_51 = arith.constant 8 : i32
    %194 = arith.muli %c4_i32, %c8_i32_51 : i32
    %195 = tpu.assume_multiple %194, 8 : i32
    %c7_i32_52 = arith.constant 7 : i32
    %196 = arith.subi %c7_i32_52, %c4_i32 : i32
    %c8_i32_53 = arith.constant 8 : i32
    %197 = arith.muli %196, %c8_i32_53 : i32
    %198 = tpu.assume_multiple %197, 8 : i32
    %199 = tpu.concatenate %182, %182 in 1 : vector<16x32xf32>, vector<16x32xf32> -> vector<16x64xf32>
    %200 = arith.mulf %199, %18 : vector<16x64xf32>
    %201 = arith.index_cast %193 : i32 to index
    %c0_54 = arith.constant 0 : index
    %202 = vector.load %arg7[%201, %c0_54] : memref<128x128xf32, #tpu.memory_space<vmem>>, vector<16x128xf32>
    %cst_55 = arith.constant dense<0.000000e+00> : vector<16x128xf32>
    %203 = tpu.matmul %200, %4, %cst_55 {dimension_numbers = #tpu.dot_dimension_numbers<[1], [0], [0], [1], [0, 0, 1, 1], [], []>} : vector<16x64xf32>, vector<64x128xf32>, vector<16x128xf32> -> vector<16x128xf32>
    %204 = arith.addf %202, %203 : vector<16x128xf32>
    %205 = arith.negf %204 : vector<16x128xf32>
    %206 = math.exp %205 : vector<16x128xf32>
    %cst_56 = arith.constant 1.000000e+00 : f32
    %207 = vector.broadcast %cst_56 : f32 to vector<16x128xf32>
    %208 = arith.addf %207, %206 : vector<16x128xf32>
    %209 = arith.divf %207, %208 : vector<16x128xf32>
    %210 = math.tanh %204 : vector<16x128xf32>
    %211 = vector.extract_strided_slice %209 {offsets = [0, 0], sizes = [16, 32], strides = [1, 1]} : vector<16x128xf32> to vector<16x32xf32>
    %212 = vector.extract_strided_slice %209 {offsets = [0, 32], sizes = [16, 32], strides = [1, 1]} : vector<16x128xf32> to vector<16x32xf32>
    %213 = vector.extract_strided_slice %210 {offsets = [0, 64], sizes = [16, 32], strides = [1, 1]} : vector<16x128xf32> to vector<16x32xf32>
    %214 = vector.extract_strided_slice %209 {offsets = [0, 96], sizes = [16, 32], strides = [1, 1]} : vector<16x128xf32> to vector<16x32xf32>
    %215 = arith.mulf %212, %183 : vector<16x32xf32>
    %216 = arith.mulf %211, %213 : vector<16x32xf32>
    %217 = arith.addf %215, %216 : vector<16x32xf32>
    %218 = math.tanh %217 : vector<16x32xf32>
    %219 = arith.mulf %214, %218 : vector<16x32xf32>
    %220 = vector.broadcast %c4_i32 : i32 to vector<16x32xi32>
    %221 = arith.cmpi sge, %220, %6 : vector<16x32xi32>
    %222 = vector.broadcast %c4_i32 : i32 to vector<16x32xi32>
    %223 = arith.cmpi slt, %222, %7 : vector<16x32xi32>
    %224 = arith.andi %221, %223 : vector<16x32xi1>
    %225 = arith.select %224, %219, %182 : vector<16x32xi1>, vector<16x32xf32>
    %226 = arith.select %224, %217, %183 : vector<16x32xi1>, vector<16x32xf32>
    %cst_57 = arith.constant 0.000000e+00 : f32
    %227 = vector.broadcast %cst_57 : f32 to vector<16x32xf32>
    %228 = arith.select %224, %219, %227 : vector<16x32xi1>, vector<16x32xf32>
    %229 = vector.extract_strided_slice %228 {offsets = [0, 0], sizes = [8, 32], strides = [1, 1]} : vector<16x32xf32> to vector<8x32xf32>
    %230 = arith.index_cast %195 : i32 to index
    %c0_58 = arith.constant 0 : index
    %231 = vector.load %arg8[%230, %c0_58] : memref<64x64xf32, #tpu.memory_space<vmem>>, vector<8x32xf32>
    tpu.vector_store %arg8[%230, %c0_58], %229 {strides = array<i32>} : memref<64x64xf32, #tpu.memory_space<vmem>>, vector<8x32xf32>,
    %232 = vector.extract_strided_slice %228 {offsets = [8, 0], sizes = [8, 32], strides = [1, 1]} : vector<16x32xf32> to vector<8x32xf32>
    %233 = arith.index_cast %198 : i32 to index
    %c32_59 = arith.constant 32 : index
    %234 = vector.load %arg8[%233, %c32_59] : memref<64x64xf32, #tpu.memory_space<vmem>>, vector<8x32xf32>
    tpu.vector_store %arg8[%233, %c32_59], %232 {strides = array<i32>} : memref<64x64xf32, #tpu.memory_space<vmem>>, vector<8x32xf32>,
    %c5_i32 = arith.constant 5 : i32
    %c16_i32_60 = arith.constant 16 : i32
    %235 = arith.muli %c5_i32, %c16_i32_60 : i32
    %236 = tpu.assume_multiple %235, 16 : i32
    %c8_i32_61 = arith.constant 8 : i32
    %237 = arith.muli %c5_i32, %c8_i32_61 : i32
    %238 = tpu.assume_multiple %237, 8 : i32
    %c7_i32_62 = arith.constant 7 : i32
    %239 = arith.subi %c7_i32_62, %c5_i32 : i32
    %c8_i32_63 = arith.constant 8 : i32
    %240 = arith.muli %239, %c8_i32_63 : i32
    %241 = tpu.assume_multiple %240, 8 : i32
    %242 = tpu.concatenate %225, %225 in 1 : vector<16x32xf32>, vector<16x32xf32> -> vector<16x64xf32>
    %243 = arith.mulf %242, %18 : vector<16x64xf32>
    %244 = arith.index_cast %236 : i32 to index
    %c0_64 = arith.constant 0 : index
    %245 = vector.load %arg7[%244, %c0_64] : memref<128x128xf32, #tpu.memory_space<vmem>>, vector<16x128xf32>
    %cst_65 = arith.constant dense<0.000000e+00> : vector<16x128xf32>
    %246 = tpu.matmul %243, %4, %cst_65 {dimension_numbers = #tpu.dot_dimension_numbers<[1], [0], [0], [1], [0, 0, 1, 1], [], []>} : vector<16x64xf32>, vector<64x128xf32>, vector<16x128xf32> -> vector<16x128xf32>
    %247 = arith.addf %245, %246 : vector<16x128xf32>
    %248 = arith.negf %247 : vector<16x128xf32>
    %249 = math.exp %248 : vector<16x128xf32>
    %cst_66 = arith.constant 1.000000e+00 : f32
    %250 = vector.broadcast %cst_66 : f32 to vector<16x128xf32>
    %251 = arith.addf %250, %249 : vector<16x128xf32>
    %252 = arith.divf %250, %251 : vector<16x128xf32>
    %253 = math.tanh %247 : vector<16x128xf32>
    %254 = vector.extract_strided_slice %252 {offsets = [0, 0], sizes = [16, 32], strides = [1, 1]} : vector<16x128xf32> to vector<16x32xf32>
    %255 = vector.extract_strided_slice %252 {offsets = [0, 32], sizes = [16, 32], strides = [1, 1]} : vector<16x128xf32> to vector<16x32xf32>
    %256 = vector.extract_strided_slice %253 {offsets = [0, 64], sizes = [16, 32], strides = [1, 1]} : vector<16x128xf32> to vector<16x32xf32>
    %257 = vector.extract_strided_slice %252 {offsets = [0, 96], sizes = [16, 32], strides = [1, 1]} : vector<16x128xf32> to vector<16x32xf32>
    %258 = arith.mulf %255, %226 : vector<16x32xf32>
    %259 = arith.mulf %254, %256 : vector<16x32xf32>
    %260 = arith.addf %258, %259 : vector<16x32xf32>
    %261 = math.tanh %260 : vector<16x32xf32>
    %262 = arith.mulf %257, %261 : vector<16x32xf32>
    %263 = vector.broadcast %c5_i32 : i32 to vector<16x32xi32>
    %264 = arith.cmpi sge, %263, %6 : vector<16x32xi32>
    %265 = vector.broadcast %c5_i32 : i32 to vector<16x32xi32>
    %266 = arith.cmpi slt, %265, %7 : vector<16x32xi32>
    %267 = arith.andi %264, %266 : vector<16x32xi1>
    %268 = arith.select %267, %262, %225 : vector<16x32xi1>, vector<16x32xf32>
    %269 = arith.select %267, %260, %226 : vector<16x32xi1>, vector<16x32xf32>
    %cst_67 = arith.constant 0.000000e+00 : f32
    %270 = vector.broadcast %cst_67 : f32 to vector<16x32xf32>
    %271 = arith.select %267, %262, %270 : vector<16x32xi1>, vector<16x32xf32>
    %272 = vector.extract_strided_slice %271 {offsets = [0, 0], sizes = [8, 32], strides = [1, 1]} : vector<16x32xf32> to vector<8x32xf32>
    %273 = arith.index_cast %238 : i32 to index
    %c0_68 = arith.constant 0 : index
    %274 = vector.load %arg8[%273, %c0_68] : memref<64x64xf32, #tpu.memory_space<vmem>>, vector<8x32xf32>
    tpu.vector_store %arg8[%273, %c0_68], %272 {strides = array<i32>} : memref<64x64xf32, #tpu.memory_space<vmem>>, vector<8x32xf32>,
    %275 = vector.extract_strided_slice %271 {offsets = [8, 0], sizes = [8, 32], strides = [1, 1]} : vector<16x32xf32> to vector<8x32xf32>
    %276 = arith.index_cast %241 : i32 to index
    %c32_69 = arith.constant 32 : index
    %277 = vector.load %arg8[%276, %c32_69] : memref<64x64xf32, #tpu.memory_space<vmem>>, vector<8x32xf32>
    tpu.vector_store %arg8[%276, %c32_69], %275 {strides = array<i32>} : memref<64x64xf32, #tpu.memory_space<vmem>>, vector<8x32xf32>,
    %c6_i32 = arith.constant 6 : i32
    %c16_i32_70 = arith.constant 16 : i32
    %278 = arith.muli %c6_i32, %c16_i32_70 : i32
    %279 = tpu.assume_multiple %278, 16 : i32
    %c8_i32_71 = arith.constant 8 : i32
    %280 = arith.muli %c6_i32, %c8_i32_71 : i32
    %281 = tpu.assume_multiple %280, 8 : i32
    %c7_i32_72 = arith.constant 7 : i32
    %282 = arith.subi %c7_i32_72, %c6_i32 : i32
    %c8_i32_73 = arith.constant 8 : i32
    %283 = arith.muli %282, %c8_i32_73 : i32
    %284 = tpu.assume_multiple %283, 8 : i32
    %285 = tpu.concatenate %268, %268 in 1 : vector<16x32xf32>, vector<16x32xf32> -> vector<16x64xf32>
    %286 = arith.mulf %285, %18 : vector<16x64xf32>
    %287 = arith.index_cast %279 : i32 to index
    %c0_74 = arith.constant 0 : index
    %288 = vector.load %arg7[%287, %c0_74] : memref<128x128xf32, #tpu.memory_space<vmem>>, vector<16x128xf32>
    %cst_75 = arith.constant dense<0.000000e+00> : vector<16x128xf32>
    %289 = tpu.matmul %286, %4, %cst_75 {dimension_numbers = #tpu.dot_dimension_numbers<[1], [0], [0], [1], [0, 0, 1, 1], [], []>} : vector<16x64xf32>, vector<64x128xf32>, vector<16x128xf32> -> vector<16x128xf32>
    %290 = arith.addf %288, %289 : vector<16x128xf32>
    %291 = arith.negf %290 : vector<16x128xf32>
    %292 = math.exp %291 : vector<16x128xf32>
    %cst_76 = arith.constant 1.000000e+00 : f32
    %293 = vector.broadcast %cst_76 : f32 to vector<16x128xf32>
    %294 = arith.addf %293, %292 : vector<16x128xf32>
    %295 = arith.divf %293, %294 : vector<16x128xf32>
    %296 = math.tanh %290 : vector<16x128xf32>
    %297 = vector.extract_strided_slice %295 {offsets = [0, 0], sizes = [16, 32], strides = [1, 1]} : vector<16x128xf32> to vector<16x32xf32>
    %298 = vector.extract_strided_slice %295 {offsets = [0, 32], sizes = [16, 32], strides = [1, 1]} : vector<16x128xf32> to vector<16x32xf32>
    %299 = vector.extract_strided_slice %296 {offsets = [0, 64], sizes = [16, 32], strides = [1, 1]} : vector<16x128xf32> to vector<16x32xf32>
    %300 = vector.extract_strided_slice %295 {offsets = [0, 96], sizes = [16, 32], strides = [1, 1]} : vector<16x128xf32> to vector<16x32xf32>
    %301 = arith.mulf %298, %269 : vector<16x32xf32>
    %302 = arith.mulf %297, %299 : vector<16x32xf32>
    %303 = arith.addf %301, %302 : vector<16x32xf32>
    %304 = math.tanh %303 : vector<16x32xf32>
    %305 = arith.mulf %300, %304 : vector<16x32xf32>
    %306 = vector.broadcast %c6_i32 : i32 to vector<16x32xi32>
    %307 = arith.cmpi sge, %306, %6 : vector<16x32xi32>
    %308 = vector.broadcast %c6_i32 : i32 to vector<16x32xi32>
    %309 = arith.cmpi slt, %308, %7 : vector<16x32xi32>
    %310 = arith.andi %307, %309 : vector<16x32xi1>
    %311 = arith.select %310, %305, %268 : vector<16x32xi1>, vector<16x32xf32>
    %312 = arith.select %310, %303, %269 : vector<16x32xi1>, vector<16x32xf32>
    %cst_77 = arith.constant 0.000000e+00 : f32
    %313 = vector.broadcast %cst_77 : f32 to vector<16x32xf32>
    %314 = arith.select %310, %305, %313 : vector<16x32xi1>, vector<16x32xf32>
    %315 = vector.extract_strided_slice %314 {offsets = [0, 0], sizes = [8, 32], strides = [1, 1]} : vector<16x32xf32> to vector<8x32xf32>
    %316 = arith.index_cast %281 : i32 to index
    %c0_78 = arith.constant 0 : index
    %317 = vector.load %arg8[%316, %c0_78] : memref<64x64xf32, #tpu.memory_space<vmem>>, vector<8x32xf32>
    tpu.vector_store %arg8[%316, %c0_78], %315 {strides = array<i32>} : memref<64x64xf32, #tpu.memory_space<vmem>>, vector<8x32xf32>,
    %318 = vector.extract_strided_slice %314 {offsets = [8, 0], sizes = [8, 32], strides = [1, 1]} : vector<16x32xf32> to vector<8x32xf32>
    %319 = arith.index_cast %284 : i32 to index
    %c32_79 = arith.constant 32 : index
    %320 = vector.load %arg8[%319, %c32_79] : memref<64x64xf32, #tpu.memory_space<vmem>>, vector<8x32xf32>
    tpu.vector_store %arg8[%319, %c32_79], %318 {strides = array<i32>} : memref<64x64xf32, #tpu.memory_space<vmem>>, vector<8x32xf32>,
    %c7_i32_80 = arith.constant 7 : i32
    %c16_i32_81 = arith.constant 16 : i32
    %321 = arith.muli %c7_i32_80, %c16_i32_81 : i32
    %322 = tpu.assume_multiple %321, 16 : i32
    %c8_i32_82 = arith.constant 8 : i32
    %323 = arith.muli %c7_i32_80, %c8_i32_82 : i32
    %324 = tpu.assume_multiple %323, 8 : i32
    %c7_i32_83 = arith.constant 7 : i32
    %325 = arith.subi %c7_i32_83, %c7_i32_80 : i32
    %c8_i32_84 = arith.constant 8 : i32
    %326 = arith.muli %325, %c8_i32_84 : i32
    %327 = tpu.assume_multiple %326, 8 : i32
    %328 = tpu.concatenate %311, %311 in 1 : vector<16x32xf32>, vector<16x32xf32> -> vector<16x64xf32>
    %329 = arith.mulf %328, %18 : vector<16x64xf32>
    %330 = arith.index_cast %322 : i32 to index
    %c0_85 = arith.constant 0 : index
    %331 = vector.load %arg7[%330, %c0_85] : memref<128x128xf32, #tpu.memory_space<vmem>>, vector<16x128xf32>
    %cst_86 = arith.constant dense<0.000000e+00> : vector<16x128xf32>
    %332 = tpu.matmul %329, %4, %cst_86 {dimension_numbers = #tpu.dot_dimension_numbers<[1], [0], [0], [1], [0, 0, 1, 1], [], []>} : vector<16x64xf32>, vector<64x128xf32>, vector<16x128xf32> -> vector<16x128xf32>
    %333 = arith.addf %331, %332 : vector<16x128xf32>
    %334 = arith.negf %333 : vector<16x128xf32>
    %335 = math.exp %334 : vector<16x128xf32>
    %cst_87 = arith.constant 1.000000e+00 : f32
    %336 = vector.broadcast %cst_87 : f32 to vector<16x128xf32>
    %337 = arith.addf %336, %335 : vector<16x128xf32>
    %338 = arith.divf %336, %337 : vector<16x128xf32>
    %339 = math.tanh %333 : vector<16x128xf32>
    %340 = vector.extract_strided_slice %338 {offsets = [0, 0], sizes = [16, 32], strides = [1, 1]} : vector<16x128xf32> to vector<16x32xf32>
    %341 = vector.extract_strided_slice %338 {offsets = [0, 32], sizes = [16, 32], strides = [1, 1]} : vector<16x128xf32> to vector<16x32xf32>
    %342 = vector.extract_strided_slice %339 {offsets = [0, 64], sizes = [16, 32], strides = [1, 1]} : vector<16x128xf32> to vector<16x32xf32>
    %343 = vector.extract_strided_slice %338 {offsets = [0, 96], sizes = [16, 32], strides = [1, 1]} : vector<16x128xf32> to vector<16x32xf32>
    %344 = arith.mulf %341, %312 : vector<16x32xf32>
    %345 = arith.mulf %340, %342 : vector<16x32xf32>
    %346 = arith.addf %344, %345 : vector<16x32xf32>
    %347 = math.tanh %346 : vector<16x32xf32>
    %348 = arith.mulf %343, %347 : vector<16x32xf32>
    %349 = vector.broadcast %c7_i32_80 : i32 to vector<16x32xi32>
    %350 = arith.cmpi sge, %349, %6 : vector<16x32xi32>
    %351 = vector.broadcast %c7_i32_80 : i32 to vector<16x32xi32>
    %352 = arith.cmpi slt, %351, %7 : vector<16x32xi32>
    %353 = arith.andi %350, %352 : vector<16x32xi1>
    %354 = arith.select %353, %348, %311 : vector<16x32xi1>, vector<16x32xf32>
    %355 = arith.select %353, %346, %312 : vector<16x32xi1>, vector<16x32xf32>
    %cst_88 = arith.constant 0.000000e+00 : f32
    %356 = vector.broadcast %cst_88 : f32 to vector<16x32xf32>
    %357 = arith.select %353, %348, %356 : vector<16x32xi1>, vector<16x32xf32>
    %358 = vector.extract_strided_slice %357 {offsets = [0, 0], sizes = [8, 32], strides = [1, 1]} : vector<16x32xf32> to vector<8x32xf32>
    %359 = arith.index_cast %324 : i32 to index
    %c0_89 = arith.constant 0 : index
    %360 = vector.load %arg8[%359, %c0_89] : memref<64x64xf32, #tpu.memory_space<vmem>>, vector<8x32xf32>
    tpu.vector_store %arg8[%359, %c0_89], %358 {strides = array<i32>} : memref<64x64xf32, #tpu.memory_space<vmem>>, vector<8x32xf32>,
    %361 = vector.extract_strided_slice %357 {offsets = [8, 0], sizes = [8, 32], strides = [1, 1]} : vector<16x32xf32> to vector<8x32xf32>
    %362 = arith.index_cast %327 : i32 to index
    %c32_90 = arith.constant 32 : index
    %363 = vector.load %arg8[%362, %c32_90] : memref<64x64xf32, #tpu.memory_space<vmem>>, vector<8x32xf32>
    tpu.vector_store %arg8[%362, %c32_90], %361 {strides = array<i32>} : memref<64x64xf32, #tpu.memory_space<vmem>>, vector<8x32xf32>,
    %c8_i32_91 = arith.constant 8 : i32
    %c0_92 = arith.constant 0 : index
    %c0_93 = arith.constant 0 : index
    %364 = vector.load %arg8[%c0_92, %c0_93] : memref<64x64xf32, #tpu.memory_space<vmem>>, vector<64x64xf32>
    %c0_94 = arith.constant 0 : index
    %c0_95 = arith.constant 0 : index
    %365 = vector.load %arg4[%c0_94, %c0_95] : memref<64x8xf32, #tpu.memory_space<vmem>>, vector<64x8xf32>
    %cst_96 = arith.constant dense<0.000000e+00> : vector<64x8xf32>
    %366 = tpu.matmul %364, %365, %cst_96 {dimension_numbers = #tpu.dot_dimension_numbers<[1], [0], [0], [1], [0, 0, 1, 1], [], []>} : vector<64x64xf32>, vector<64x8xf32>, vector<64x8xf32> -> vector<64x8xf32>
    %c0_97 = arith.constant 0 : index
    %c0_98 = arith.constant 0 : index
    %367 = vector.load %arg5[%c0_97, %c0_98] : memref<1x8xf32, #tpu.memory_space<vmem>>, vector<1x8xf32>
    %368 = vector.broadcast %367 : vector<1x8xf32> to vector<64x8xf32>
    %369 = arith.addf %366, %368 : vector<64x8xf32>
    %c0_99 = arith.constant 0 : index
    %c0_100 = arith.constant 0 : index
    %370 = vector.load %arg6[%c0_99, %c0_100] : memref<64x8xf32, #tpu.memory_space<vmem>>, vector<64x8xf32>
    tpu.vector_store %arg6[%c0_99, %c0_100], %369 {strides = array<i32>} : memref<64x8xf32, #tpu.memory_space<vmem>>, vector<64x8xf32>,
    return
  }
}

</mosaic_0001>

<llo_original>
// kernel: tpu_custom_call.1
$region0: #{tpu_custom_call.1}
  #allocation0 [shape = 'u32[]', space=smem, size = 0x4, offset = 0x4, fixed_abs, tag = 'smem constant byte address 0x4 - core index']
  #allocation1 [shape = 'u32[72,128]{1,0:T(1,128)}', space=vmem, size = 0x9000, scoped, tag = 'internal scratch']
  #allocation2 [shape = 'f32[128,128]{1,0:T(8,128)}', space=vmem, size = 0x10000, scoped, tag = 'scratch operand']
  #allocation3 [shape = 'f32[64,64]{1,0:T(8,128)}', space=vmem, size = 0x8000, scoped, tag = 'scratch operand']
  %s0 = inlined_call_operand.vmem [shape: f32[128,66], index: 0, kind: input, shape index: {}]
  %s1 = inlined_call_operand.vmem [shape: f32[66,128], index: 1, kind: input, shape index: {}]
  %s2 = inlined_call_operand.vmem [shape: f32[64,128], index: 2, kind: input, shape index: {}]
  %s3 = inlined_call_operand.vmem [shape: s32[16,64], index: 3, kind: input, shape index: {}]
  %s4 = inlined_call_operand.vmem [shape: f32[64,8], index: 4, kind: input, shape index: {}]
  %s5 = inlined_call_operand.vmem [shape: f32[1,8], index: 5, kind: input, shape index: {}]
  %s6 = inlined_call_operand.vmem [shape: f32[64,8], index: 6, kind: output, shape index: {}]
  %s7 = sld [smem:[#allocation0]]
  $region34: #{tpu_custom_call.1} parent=0
    _
  %s9 = ssub.s32 1, %s7
  %s10 = scalar_select 0, %s9, %s7
  // Predicated region
  $region2: #{tpu_custom_call.1} parent=0 // pred_check
    _
  $region3: #{tpu_custom_call.1} parent=0 // pred_check_branch
    %12 = sbr.rel (0) target = $region5
  $region4: #{tpu_custom_call.1} parent=0 // pred_region
    _
  $region5: #{tpu_custom_call.1} parent=0 // pred_fallthru
    _
  // Predicated region
  $region6: #{tpu_custom_call.1} parent=0 // pred_check
    _
  $region7: #{tpu_custom_call.1} parent=0 // pred_check_branch
    %14 = sbr.rel (0) target = $region9
  $region8: #{tpu_custom_call.1} parent=0 // pred_region
    _
  $region9: #{tpu_custom_call.1} parent=0 // pred_fallthru
    _
  // Predicated region
  $region10: #{tpu_custom_call.1} parent=0 // pred_check
    _
  $region11: #{tpu_custom_call.1} parent=0 // pred_check_branch
    %16 = sbr.rel (0) target = $region13
  $region12: #{tpu_custom_call.1} parent=0 // pred_region
    _
  $region13: #{tpu_custom_call.1} parent=0 // pred_fallthru
    _
  // Predicated region
  $region14: #{tpu_custom_call.1} parent=0 // pred_check
    _
  $region15: #{tpu_custom_call.1} parent=0 // pred_check_branch
    %18 = sbr.rel (0) target = $region17
  $region16: #{tpu_custom_call.1} parent=0 // pred_region
    _
  $region17: #{tpu_custom_call.1} parent=0 // pred_fallthru
    _
  // Predicated region
  $region18: #{tpu_custom_call.1} parent=0 // pred_check
    _
  $region19: #{tpu_custom_call.1} parent=0 // pred_check_branch
    %20 = sbr.rel (0) target = $region21
  $region20: #{tpu_custom_call.1} parent=0 // pred_region
    _
  $region21: #{tpu_custom_call.1} parent=0 // pred_fallthru
    _
  // Predicated region
  $region22: #{tpu_custom_call.1} parent=0 // pred_check
    _
  $region23: #{tpu_custom_call.1} parent=0 // pred_check_branch
    %22 = sbr.rel (0) target = $region25
  $region24: #{tpu_custom_call.1} parent=0 // pred_region
    _
  $region25: #{tpu_custom_call.1} parent=0 // pred_fallthru
    _
  %v23 = vld [vmem:[%s0] sm:$0xff]
  %v24 = vld [vmem:[%s0 + $0x8] sm:$0xff]
  %v25 = vld [vmem:[%s0 + $0x10] sm:$0xff]
  %v26 = vld [vmem:[%s0 + $0x18] sm:$0xff]
  %v27 = vld [vmem:[%s0 + $0x20] sm:$0xff]
  %v28 = vld [vmem:[%s0 + $0x28] sm:$0xff]
  %v29 = vld [vmem:[%s0 + $0x30] sm:$0xff]
  %v30 = vld [vmem:[%s0 + $0x38] sm:$0xff]
  %v31 = vld [vmem:[%s0 + $0x40] sm:$0xff]
  %v32 = vld [vmem:[%s0 + $0x48] sm:$0xff]
  %v33 = vld [vmem:[%s0 + $0x50] sm:$0xff]
  %v34 = vld [vmem:[%s0 + $0x58] sm:$0xff]
  %v35 = vld [vmem:[%s0 + $0x60] sm:$0xff]
  %v36 = vld [vmem:[%s0 + $0x68] sm:$0xff]
  %v37 = vld [vmem:[%s0 + $0x70] sm:$0xff]
  %v38 = vld [vmem:[%s0 + $0x78] sm:$0xff]
  %v39 = vld [vmem:[%s1] sm:$0xff]
  %v40 = vld [vmem:[%s1 + $0x8] sm:$0xff]
  %v41 = vld [vmem:[%s1 + $0x10] sm:$0xff]
  %v42 = vld [vmem:[%s1 + $0x18] sm:$0xff]
  %v43 = vld [vmem:[%s1 + $0x20] sm:$0xff]
  %v44 = vld [vmem:[%s1 + $0x28] sm:$0xff]
  %v45 = vld [vmem:[%s1 + $0x30] sm:$0xff]
  %v46 = vld [vmem:[%s1 + $0x38] sm:$0xff]
  %v47 = vld [vmem:[%s1 + $0x40] sm:$0x3]
  %vm48 = vcmask 539648
  %v50 = vsel %vm48, %v23, 0
  %v53 = vsel %vm48, %v24, 0
  %v56 = vsel %vm48, %v25, 0
  %v59 = vsel %vm48, %v26, 0
  %v62 = vsel %vm48, %v27, 0
  %v65 = vsel %vm48, %v28, 0
  %v68 = vsel %vm48, %v29, 0
  %v71 = vsel %vm48, %v30, 0
  %v74 = vsel %vm48, %v31, 0
  %v77 = vsel %vm48, %v32, 0
  %v80 = vsel %vm48, %v33, 0
  %v83 = vsel %vm48, %v34, 0
  %v86 = vsel %vm48, %v35, 0
  %v89 = vsel %vm48, %v36, 0
  %v92 = vsel %vm48, %v37, 0
  %v95 = vsel %vm48, %v38, 0
  %vm97 = vcmask 1041408
  %v99 = vsel %vm97, %v47, 0
  %101 = vmatpush.msra.mxu0 0.0
  %102 = vmatpush.msra.mxu0 0.0
  %103 = vmatpush.msra.mxu0 0.0
  %104 = vmatpush.msra.mxu0 0.0
  %105 = vmatpush.msra.mxu0 0.0
  %106 = vmatpush.msra.mxu0 0.0
  %107 = vmatpush.msra.mxu0 0.0
  %108 = vmatpush.msra.mxu0 %v99
  %109 = vmatpush.msra.mxu0 %v46
  %110 = vmatpush.msra.mxu0 %v45
  %111 = vmatpush.msra.mxu0 %v44
  %112 = vmatpush.msra.mxu0 %v43
  %113 = vmatpush.msra.mxu0 %v42
  %114 = vmatpush.msra.mxu0 %v41
  %115 = vmatpush.msra.mxu0 %v40
  %116 = vmatpush.msra.mxu0 %v39
  %117 = vmatmul.f32.gmra.mxu0 %v50
  %v118 = vpop.f32.mrf.mxu0
  %v119 = vadd.f32 0.0, %v118
  %120 = vmatmul.f32.gmra.mxu0 %v53
  %v121 = vpop.f32.mrf.mxu0
  %v122 = vadd.f32 0.0, %v121
  %123 = vmatmul.f32.gmra.mxu0 %v56
  %v124 = vpop.f32.mrf.mxu0
  %v125 = vadd.f32 0.0, %v124
  %126 = vmatmul.f32.gmra.mxu0 %v59
  %v127 = vpop.f32.mrf.mxu0
  %v128 = vadd.f32 0.0, %v127
  %129 = vmatmul.f32.gmra.mxu0 %v62
  %v130 = vpop.f32.mrf.mxu0
  %v131 = vadd.f32 0.0, %v130
  %132 = vmatmul.f32.gmra.mxu0 %v65
  %v133 = vpop.f32.mrf.mxu0
  %v134 = vadd.f32 0.0, %v133
  %135 = vmatmul.f32.gmra.mxu0 %v68
  %v136 = vpop.f32.mrf.mxu0
  %v137 = vadd.f32 0.0, %v136
  %138 = vmatmul.f32.gmra.mxu0 %v71
  %v139 = vpop.f32.mrf.mxu0
  %v140 = vadd.f32 0.0, %v139
  %141 = vmatmul.f32.gmra.mxu0 %v74
  %v142 = vpop.f32.mrf.mxu0
  %v143 = vadd.f32 0.0, %v142
  %144 = vmatmul.f32.gmra.mxu0 %v77
  %v145 = vpop.f32.mrf.mxu0
  %v146 = vadd.f32 0.0, %v145
  %147 = vmatmul.f32.gmra.mxu0 %v80
  %v148 = vpop.f32.mrf.mxu0
  %v149 = vadd.f32 0.0, %v148
  %150 = vmatmul.f32.gmra.mxu0 %v83
  %v151 = vpop.f32.mrf.mxu0
  %v152 = vadd.f32 0.0, %v151
  %153 = vmatmul.f32.gmra.mxu0 %v86
  %v154 = vpop.f32.mrf.mxu0
  %v155 = vadd.f32 0.0, %v154
  %156 = vmatmul.f32.gmra.mxu0 %v89
  %v157 = vpop.f32.mrf.mxu0
  %v158 = vadd.f32 0.0, %v157
  %159 = vmatmul.f32.gmra.mxu0 %v92
  %v160 = vpop.f32.mrf.mxu0
  %v161 = vadd.f32 0.0, %v160
  %162 = vmatmul.f32.gmra.mxu0 %v95
  %v163 = vpop.f32.mrf.mxu0
  %v164 = vadd.f32 0.0, %v163
  %165 = vdwg.mxu0
  %166 = vst [vmem:[#allocation2] sm:$0xff] %v119
  %167 = vst [vmem:[#allocation2 + $0x8] sm:$0xff] %v122
  %168 = vst [vmem:[#allocation2 + $0x10] sm:$0xff] %v125
  %169 = vst [vmem:[#allocation2 + $0x18] sm:$0xff] %v128
  %170 = vst [vmem:[#allocation2 + $0x20] sm:$0xff] %v131
  %171 = vst [vmem:[#allocation2 + $0x28] sm:$0xff] %v134
  %172 = vst [vmem:[#allocation2 + $0x30] sm:$0xff] %v137
  %173 = vst [vmem:[#allocation2 + $0x38] sm:$0xff] %v140
  %174 = vst [vmem:[#allocation2 + $0x40] sm:$0xff] %v143
  %175 = vst [vmem:[#allocation2 + $0x48] sm:$0xff] %v146
  %176 = vst [vmem:[#allocation2 + $0x50] sm:$0xff] %v149
  %177 = vst [vmem:[#allocation2 + $0x58] sm:$0xff] %v152
  %178 = vst [vmem:[#allocation2 + $0x60] sm:$0xff] %v155
  %179 = vst [vmem:[#allocation2 + $0x68] sm:$0xff] %v158
  %180 = vst [vmem:[#allocation2 + $0x70] sm:$0xff] %v161
  %181 = vst [vmem:[#allocation2 + $0x78] sm:$0xff] %v164
  %v182 = vld [vmem:[%s2] sm:$0xff]
  %v183 = vld [vmem:[%s2 + $0x8] sm:$0xff]
  %v184 = vld [vmem:[%s2 + $0x10] sm:$0xff]
  %v185 = vld [vmem:[%s2 + $0x18] sm:$0xff]
  %v186 = vld [vmem:[%s2 + $0x20] sm:$0xff]
  %v187 = vld [vmem:[%s2 + $0x28] sm:$0xff]
  %v188 = vld [vmem:[%s2 + $0x30] sm:$0xff]
  %v189 = vld [vmem:[%s2 + $0x38] sm:$0xff]
  %v190 = vld [vmem:[%s3] sm:$0xff]
  %v191 = vld [vmem:[%s3 + $0x8] sm:$0xff]
  %v192 = vlaneseq
  %v193 = vshrl.u32 %v192, 7
  %v194 = vadd.s32 %v193, 8
  %v195 = vlaneseq
  %v196 = vand.u32 %v195, 127
  %vm197 = vcmp.lt.s32.totalorder %v193, 8
  %vm198 = vcmp.lt.s32.totalorder %v194, 8
  %vm199 = vcmp.lt.s32.totalorder %v196, 32
  %vm200 = vmxor %vm197, %vm199
  %vm201 = vmxor %vm198, %vm199
  %vm202 = vmxor %vm200, 1
  %vm203 = vmxor %vm201, 1
  %v204 = vsel %vm202, 1.0, 0.0
  %v205 = vsel %vm203, 1.0, 0.0
  %v206 = vmul.f32 %v204, 0.0
  %v207 = vmul.f32 %v205, 0.0
  %v208 = vld [vmem:[#allocation2] sm:$0xff]
  %v209 = vld [vmem:[#allocation2 + $0x8] sm:$0xff]
  %vm210 = vcmask 523264
  %v212 = vsel %vm210, %v206, 0
  %v215 = vsel %vm210, %v207, 0
  %217 = vmatpush.msra.mxu0 0.0
  %218 = vmatpush.msra.mxu0 0.0
  %219 = vmatpush.msra.mxu0 0.0
  %220 = vmatpush.msra.mxu0 0.0
  %221 = vmatpush.msra.mxu0 0.0
  %222 = vmatpush.msra.mxu0 0.0
  %223 = vmatpush.msra.mxu0 0.0
  %224 = vmatpush.msra.mxu0 0.0
  %225 = vmatpush.msra.mxu0 %v189
  %226 = vmatpush.msra.mxu0 %v188
  %227 = vmatpush.msra.mxu0 %v187
  %228 = vmatpush.msra.mxu0 %v186
  %229 = vmatpush.msra.mxu0 %v185
  %230 = vmatpush.msra.mxu0 %v184
  %231 = vmatpush.msra.mxu0 %v183
  %232 = vmatpush.msra.mxu0 %v182
  %233 = vmatmul.f32.gmra.mxu0 %v212
  %v234 = vpop.f32.mrf.mxu0
  %v235 = vadd.f32 0.0, %v234
  %236 = vmatmul.f32.gmra.mxu0 %v215
  %v237 = vpop.f32.mrf.mxu0
  %v238 = vadd.f32 0.0, %v237
  %239 = vdwg.mxu0
  %v240 = vadd.f32 %v208, %v235
  %v241 = vadd.f32 %v209, %v238
  %v242 = vxor.u32 %v240, 2147483648
  %v243 = vxor.u32 %v241, 2147483648
  %v244 = vmul.f32 %v242, 1.442695
  %v245 = vpow.pop %v244
  %v246 = vmul.f32 %v243, 1.442695
  %v247 = vpow.pop %v246
  %v248 = vadd.f32 %v245, 1.0
  %v249 = vadd.f32 %v247, 1.0
  %v250 = vrcp.pop %v248
  %v251 = vmul.f32 %v248, %v250
  %v252 = vsub.f32 1.0, %v251
  %v253 = vmul.f32 %v250, %v252
  %v254 = vadd.f32 %v250, %v253
  %vm255 = vweird.f32 %v248
  %vm256 = vweird.f32 %v250
  %vm257 = vmor %vm255, %vm256
  %v258 = vsel %vm257, %v250, %v254
  %v259 = vand.u32 2147483647, %v248
  %vm260 = vcmp.eq.f32.partialorder %v259, 8.507059e+37
  %v261 = vand.u32 %v248, 2147483648
  %v262 = vor.u32 1.1754944e-38, %v261
  %v263 = vsel %vm260, %v262, %v258
  %v264 = vmul.f32 1.0, %v263
  %v265 = vrcp.pop %v249
  %v266 = vmul.f32 %v249, %v265
  %v267 = vsub.f32 1.0, %v266
  %v268 = vmul.f32 %v265, %v267
  %v269 = vadd.f32 %v265, %v268
  %vm270 = vweird.f32 %v249
  %vm271 = vweird.f32 %v265
  %vm272 = vmor %vm270, %vm271
  %v273 = vsel %vm272, %v265, %v269
  %v274 = vand.u32 2147483647, %v249
  %vm275 = vcmp.eq.f32.partialorder %v274, 8.507059e+37
  %v276 = vand.u32 %v249, 2147483648
  %v277 = vor.u32 1.1754944e-38, %v276
  %v278 = vsel %vm275, %v277, %v273
  %v279 = vmul.f32 1.0, %v278
  %v280 = vtanh.pop %v240
  %v281 = vtanh.pop %v241
  %v282 = vmul.f32 %v264, 0.0
  %v283 = vmul.f32 %v279, 0.0
  %286 = vrot.lane.b32.xlu0 %v280, 64
  %v287 = vpop.permute.xlu0 %286
  %288 = vrot.lane.b32.xlu0 %v281, 64
  %v289 = vpop.permute.xlu0 %288
  %v292 = vmul.f32 %v264, %v287
  %v293 = vmul.f32 %v279, %v289
  %296 = vrot.lane.b32.xlu0 %v292, 32
  %v297 = vpop.permute.xlu0 %296
  %298 = vrot.lane.b32.xlu0 %v293, 32
  %v299 = vpop.permute.xlu0 %298
  %v302 = vadd.f32 %v282, %v297
  %v303 = vadd.f32 %v283, %v299
  %v304 = vtanh.pop %v302
  %v305 = vtanh.pop %v303
  %308 = vrot.lane.b32.xlu0 %v304, 64
  %v309 = vpop.permute.xlu0 %308
  %310 = vrot.lane.b32.xlu0 %v305, 64
  %v311 = vpop.permute.xlu0 %310
  %v314 = vmul.f32 %v264, %v309
  %v315 = vmul.f32 %v279, %v311
  %vm316 = vcmp.le.s32.totalorder %v190, 0
  %vm317 = vcmp.le.s32.totalorder %v191, 0
  %vm318 = vcmp.gt.s32.totalorder %v190, 0
  %vm319 = vcmp.gt.s32.totalorder %v191, 0
  %v320 = vsel %vm318, 1, 0
  %v321 = vsel %vm319, 1, 0
  %322 = vrot.lane.b32.xlu0 %v320, 96
  %v323 = vpop.permute.xlu0 %322
  %324 = vrot.lane.b32.xlu0 %v321, 96
  %v325 = vpop.permute.xlu0 %324
  %vm326 = vcmp.ne.s32.totalorder %v323, 0
  %vm327 = vcmp.ne.s32.totalorder %v325, 0
  %vm328 = vmand %vm316, %vm326
  %vm329 = vmand %vm317, %vm327
  %332 = vrot.lane.b32.xlu0 %v314, 32
  %v333 = vpop.permute.xlu0 %332
  %334 = vrot.lane.b32.xlu0 %v315, 32
  %v335 = vpop.permute.xlu0 %334
  %v338 = vsel %vm328, %v333, 0.0
  %v339 = vsel %vm329, %v335, 0.0
  %342 = vrot.lane.b32.xlu0 %v302, 96
  %v343 = vpop.permute.xlu0 %342
  %344 = vrot.lane.b32.xlu0 %v303, 96
  %v345 = vpop.permute.xlu0 %344
  %v348 = vsel %vm328, %v343, 0.0
  %v349 = vsel %vm329, %v345, 0.0
  %vm350 = vcmask 261120
  %351 = vst.msk [vmem:[#allocation3] sm:$0xff] %vm350, %v338
  %353 = vrot.lane.b32.xlu0 %v339, 32
  %v354 = vpop.permute.xlu0 %353
  %s356 = scalar_lea.vmem [#allocation3], 56
  %vm357 = vcmask 523520
  %358 = vst.msk [vmem:[%s356] sm:$0xff] %vm357, %v354
  %360 = vrot.lane.b32.xlu0 %v338, 32
  %v361 = vpop.permute.xlu0 %360
  %v363 = vsel %vm350, %v338, %v361
  %v364 = vsel %vm350, %v339, %v354
  %v365 = vmul.f32 %v363, %v204
  %v366 = vmul.f32 %v364, %v205
  %s367 = scalar_lea.vmem [#allocation2], 16
  %v368 = vld [vmem:[%s367] sm:$0xff]
  %v369 = vld [vmem:[%s367 + $0x8] sm:$0xff]
  %v371 = vsel %vm210, %v365, 0
  %v374 = vsel %vm210, %v366, 0
  %376 = vmatpush.msra.mxu0 0.0
  %377 = vmatpush.msra.mxu0 0.0
  %378 = vmatpush.msra.mxu0 0.0
  %379 = vmatpush.msra.mxu0 0.0
  %380 = vmatpush.msra.mxu0 0.0
  %381 = vmatpush.msra.mxu0 0.0
  %382 = vmatpush.msra.mxu0 0.0
  %383 = vmatpush.msra.mxu0 0.0
  %384 = vmatpush.msra.mxu0 %v189
  %385 = vmatpush.msra.mxu0 %v188
  %386 = vmatpush.msra.mxu0 %v187
  %387 = vmatpush.msra.mxu0 %v186
  %388 = vmatpush.msra.mxu0 %v185
  %389 = vmatpush.msra.mxu0 %v184
  %390 = vmatpush.msra.mxu0 %v183
  %391 = vmatpush.msra.mxu0 %v182
  %392 = vmatmul.f32.gmra.mxu0 %v371
  %v393 = vpop.f32.mrf.mxu0
  %v394 = vadd.f32 0.0, %v393
  %395 = vmatmul.f32.gmra.mxu0 %v374
  %v396 = vpop.f32.mrf.mxu0
  %v397 = vadd.f32 0.0, %v396
  %398 = vdwg.mxu0
  %v399 = vadd.f32 %v368, %v394
  %v400 = vadd.f32 %v369, %v397
  %v401 = vxor.u32 %v399, 2147483648
  %v402 = vxor.u32 %v400, 2147483648
  %v403 = vmul.f32 %v401, 1.442695
  %v404 = vpow.pop %v403
  %v405 = vmul.f32 %v402, 1.442695
  %v406 = vpow.pop %v405
  %v407 = vadd.f32 %v404, 1.0
  %v408 = vadd.f32 %v406, 1.0
  %v409 = vrcp.pop %v407
  %v410 = vmul.f32 %v407, %v409
  %v411 = vsub.f32 1.0, %v410
  %v412 = vmul.f32 %v409, %v411
  %v413 = vadd.f32 %v409, %v412
  %vm414 = vweird.f32 %v407
  %vm415 = vweird.f32 %v409
  %vm416 = vmor %vm414, %vm415
  %v417 = vsel %vm416, %v409, %v413
  %v418 = vand.u32 2147483647, %v407
  %vm419 = vcmp.eq.f32.partialorder %v418, 8.507059e+37
  %v420 = vand.u32 %v407, 2147483648
  %v421 = vor.u32 1.1754944e-38, %v420
  %v422 = vsel %vm419, %v421, %v417
  %v423 = vmul.f32 1.0, %v422
  %v424 = vrcp.pop %v408
  %v425 = vmul.f32 %v408, %v424
  %v426 = vsub.f32 1.0, %v425
  %v427 = vmul.f32 %v424, %v426
  %v428 = vadd.f32 %v424, %v427
  %vm429 = vweird.f32 %v408
  %vm430 = vweird.f32 %v424
  %vm431 = vmor %vm429, %vm430
  %v432 = vsel %vm431, %v424, %v428
  %v433 = vand.u32 2147483647, %v408
  %vm434 = vcmp.eq.f32.partialorder %v433, 8.507059e+37
  %v435 = vand.u32 %v408, 2147483648
  %v436 = vor.u32 1.1754944e-38, %v435
  %v437 = vsel %vm434, %v436, %v432
  %v438 = vmul.f32 1.0, %v437
  %v439 = vtanh.pop %v399
  %v440 = vtanh.pop %v400
  %443 = vrot.lane.b32.xlu0 %v348, 32
  %v444 = vpop.permute.xlu0 %443
  %445 = vrot.lane.b32.xlu0 %v349, 32
  %v446 = vpop.permute.xlu0 %445
  %v449 = vmul.f32 %v423, %v444
  %v450 = vmul.f32 %v438, %v446
  %453 = vrot.lane.b32.xlu0 %v439, 64
  %v454 = vpop.permute.xlu0 %453
  %455 = vrot.lane.b32.xlu0 %v440, 64
  %v456 = vpop.permute.xlu0 %455
  %v459 = vmul.f32 %v423, %v454
  %v460 = vmul.f32 %v438, %v456
  %463 = vrot.lane.b32.xlu0 %v459, 32
  %v464 = vpop.permute.xlu0 %463
  %465 = vrot.lane.b32.xlu0 %v460, 32
  %v466 = vpop.permute.xlu0 %465
  %v469 = vadd.f32 %v449, %v464
  %v470 = vadd.f32 %v450, %v466
  %v471 = vtanh.pop %v469
  %v472 = vtanh.pop %v470
  %475 = vrot.lane.b32.xlu0 %v471, 64
  %v476 = vpop.permute.xlu0 %475
  %477 = vrot.lane.b32.xlu0 %v472, 64
  %v478 = vpop.permute.xlu0 %477
  %v481 = vmul.f32 %v423, %v476
  %v482 = vmul.f32 %v438, %v478
  %vm483 = vcmp.le.s32.totalorder %v190, 1
  %vm484 = vcmp.le.s32.totalorder %v191, 1
  %vm485 = vcmp.gt.s32.totalorder %v190, 1
  %vm486 = vcmp.gt.s32.totalorder %v191, 1
  %v487 = vsel %vm485, 1, 0
  %v488 = vsel %vm486, 1, 0
  %489 = vrot.lane.b32.xlu0 %v487, 96
  %v490 = vpop.permute.xlu0 %489
  %491 = vrot.lane.b32.xlu0 %v488, 96
  %v492 = vpop.permute.xlu0 %491
  %vm493 = vcmp.ne.s32.totalorder %v490, 0
  %vm494 = vcmp.ne.s32.totalorder %v492, 0
  %vm495 = vmand %vm483, %vm493
  %vm496 = vmand %vm484, %vm494
  %499 = vrot.lane.b32.xlu0 %v481, 32
  %v500 = vpop.permute.xlu0 %499
  %501 = vrot.lane.b32.xlu0 %v482, 32
  %v502 = vpop.permute.xlu0 %501
  %v505 = vsel %vm495, %v500, %v338
  %v506 = vsel %vm496, %v502, %v339
  %509 = vrot.lane.b32.xlu0 %v469, 96
  %v510 = vpop.permute.xlu0 %509
  %511 = vrot.lane.b32.xlu0 %v470, 96
  %v512 = vpop.permute.xlu0 %511
  %v515 = vsel %vm495, %v510, %v348
  %v516 = vsel %vm496, %v512, %v349
  %v517 = vsel %vm495, %v500, 0.0
  %v518 = vsel %vm496, %v502, 0.0
  %s519 = scalar_lea.vmem [#allocation3], 8
  %520 = vst.msk [vmem:[%s519] sm:$0xff] %vm350, %v517
  %522 = vrot.lane.b32.xlu0 %v518, 32
  %v523 = vpop.permute.xlu0 %522
  %s525 = scalar_lea.vmem [#allocation3], 48
  %526 = vst.msk [vmem:[%s525] sm:$0xff] %vm357, %v523
  %529 = vrot.lane.b32.xlu0 %v505, 32
  %v530 = vpop.permute.xlu0 %529
  %531 = vrot.lane.b32.xlu0 %v506, 32
  %v532 = vpop.permute.xlu0 %531
  %v535 = vsel %vm350, %v505, %v530
  %v536 = vsel %vm350, %v506, %v532
  %v537 = vmul.f32 %v535, %v204
  %v538 = vmul.f32 %v536, %v205
  %s539 = scalar_lea.vmem [#allocation2], 32
  %v540 = vld [vmem:[%s539] sm:$0xff]
  %v541 = vld [vmem:[%s539 + $0x8] sm:$0xff]
  %v543 = vsel %vm210, %v537, 0
  %v546 = vsel %vm210, %v538, 0
  %548 = vmatpush.msra.mxu0 0.0
  %549 = vmatpush.msra.mxu0 0.0
  %550 = vmatpush.msra.mxu0 0.0
  %551 = vmatpush.msra.mxu0 0.0
  %552 = vmatpush.msra.mxu0 0.0
  %553 = vmatpush.msra.mxu0 0.0
  %554 = vmatpush.msra.mxu0 0.0
  %555 = vmatpush.msra.mxu0 0.0
  %556 = vmatpush.msra.mxu0 %v189
  %557 = vmatpush.msra.mxu0 %v188
  %558 = vmatpush.msra.mxu0 %v187
  %559 = vmatpush.msra.mxu0 %v186
  %560 = vmatpush.msra.mxu0 %v185
  %561 = vmatpush.msra.mxu0 %v184
  %562 = vmatpush.msra.mxu0 %v183
  %563 = vmatpush.msra.mxu0 %v182
  %564 = vmatmul.f32.gmra.mxu0 %v543
  %v565 = vpop.f32.mrf.mxu0
  %v566 = vadd.f32 0.0, %v565
  %567 = vmatmul.f32.gmra.mxu0 %v546
  %v568 = vpop.f32.mrf.mxu0
  %v569 = vadd.f32 0.0, %v568
  %570 = vdwg.mxu0
  %v571 = vadd.f32 %v540, %v566
  %v572 = vadd.f32 %v541, %v569
  %v573 = vxor.u32 %v571, 2147483648
  %v574 = vxor.u32 %v572, 2147483648
  %v575 = vmul.f32 %v573, 1.442695
  %v576 = vpow.pop %v575
  %v577 = vmul.f32 %v574, 1.442695
  %v578 = vpow.pop %v577
  %v579 = vadd.f32 %v576, 1.0
  %v580 = vadd.f32 %v578, 1.0
  %v581 = vrcp.pop %v579
  %v582 = vmul.f32 %v579, %v581
  %v583 = vsub.f32 1.0, %v582
  %v584 = vmul.f32 %v581, %v583
  %v585 = vadd.f32 %v581, %v584
  %vm586 = vweird.f32 %v579
  %vm587 = vweird.f32 %v581
  %vm588 = vmor %vm586, %vm587
  %v589 = vsel %vm588, %v581, %v585
  %v590 = vand.u32 2147483647, %v579
  %vm591 = vcmp.eq.f32.partialorder %v590, 8.507059e+37
  %v592 = vand.u32 %v579, 2147483648
  %v593 = vor.u32 1.1754944e-38, %v592
  %v594 = vsel %vm591, %v593, %v589
  %v595 = vmul.f32 1.0, %v594
  %v596 = vrcp.pop %v580
  %v597 = vmul.f32 %v580, %v596
  %v598 = vsub.f32 1.0, %v597
  %v599 = vmul.f32 %v596, %v598
  %v600 = vadd.f32 %v596, %v599
  %vm601 = vweird.f32 %v580
  %vm602 = vweird.f32 %v596
  %vm603 = vmor %vm601, %vm602
  %v604 = vsel %vm603, %v596, %v600
  %v605 = vand.u32 2147483647, %v580
  %vm606 = vcmp.eq.f32.partialorder %v605, 8.507059e+37
  %v607 = vand.u32 %v580, 2147483648
  %v608 = vor.u32 1.1754944e-38, %v607
  %v609 = vsel %vm606, %v608, %v604
  %v610 = vmul.f32 1.0, %v609
  %v611 = vtanh.pop %v571
  %v612 = vtanh.pop %v572
  %615 = vrot.lane.b32.xlu0 %v515, 32
  %v616 = vpop.permute.xlu0 %615
  %617 = vrot.lane.b32.xlu0 %v516, 32
  %v618 = vpop.permute.xlu0 %617
  %v621 = vmul.f32 %v595, %v616
  %v622 = vmul.f32 %v610, %v618
  %625 = vrot.lane.b32.xlu0 %v611, 64
  %v626 = vpop.permute.xlu0 %625
  %627 = vrot.lane.b32.xlu0 %v612, 64
  %v628 = vpop.permute.xlu0 %627
  %v631 = vmul.f32 %v595, %v626
  %v632 = vmul.f32 %v610, %v628
  %635 = vrot.lane.b32.xlu0 %v631, 32
  %v636 = vpop.permute.xlu0 %635
  %637 = vrot.lane.b32.xlu0 %v632, 32
  %v638 = vpop.permute.xlu0 %637
  %v641 = vadd.f32 %v621, %v636
  %v642 = vadd.f32 %v622, %v638
  %v643 = vtanh.pop %v641
  %v644 = vtanh.pop %v642
  %647 = vrot.lane.b32.xlu0 %v643, 64
  %v648 = vpop.permute.xlu0 %647
  %649 = vrot.lane.b32.xlu0 %v644, 64
  %v650 = vpop.permute.xlu0 %649
  %v653 = vmul.f32 %v595, %v648
  %v654 = vmul.f32 %v610, %v650
  %vm655 = vcmp.le.s32.totalorder %v190, 2
  %vm656 = vcmp.le.s32.totalorder %v191, 2
  %vm657 = vcmp.gt.s32.totalorder %v190, 2
  %vm658 = vcmp.gt.s32.totalorder %v191, 2
  %v659 = vsel %vm657, 1, 0
  %v660 = vsel %vm658, 1, 0
  %661 = vrot.lane.b32.xlu0 %v659, 96
  %v662 = vpop.permute.xlu0 %661
  %663 = vrot.lane.b32.xlu0 %v660, 96
  %v664 = vpop.permute.xlu0 %663
  %vm665 = vcmp.ne.s32.totalorder %v662, 0
  %vm666 = vcmp.ne.s32.totalorder %v664, 0
  %vm667 = vmand %vm655, %vm665
  %vm668 = vmand %vm656, %vm666
  %671 = vrot.lane.b32.xlu0 %v653, 32
  %v672 = vpop.permute.xlu0 %671
  %673 = vrot.lane.b32.xlu0 %v654, 32
  %v674 = vpop.permute.xlu0 %673
  %v677 = vsel %vm667, %v672, %v505
  %v678 = vsel %vm668, %v674, %v506
  %681 = vrot.lane.b32.xlu0 %v641, 96
  %v682 = vpop.permute.xlu0 %681
  %683 = vrot.lane.b32.xlu0 %v642, 96
  %v684 = vpop.permute.xlu0 %683
  %v687 = vsel %vm667, %v682, %v515
  %v688 = vsel %vm668, %v684, %v516
  %v689 = vsel %vm667, %v672, 0.0
  %v690 = vsel %vm668, %v674, 0.0
  %s691 = scalar_lea.vmem [#allocation3], 16
  %692 = vst.msk [vmem:[%s691] sm:$0xff] %vm350, %v689
  %694 = vrot.lane.b32.xlu0 %v690, 32
  %v695 = vpop.permute.xlu0 %694
  %s697 = scalar_lea.vmem [#allocation3], 40
  %698 = vst.msk [vmem:[%s697] sm:$0xff] %vm357, %v695
  %701 = vrot.lane.b32.xlu0 %v677, 32
  %v702 = vpop.permute.xlu0 %701
  %703 = vrot.lane.b32.xlu0 %v678, 32
  %v704 = vpop.permute.xlu0 %703
  %v707 = vsel %vm350, %v677, %v702
  %v708 = vsel %vm350, %v678, %v704
  %v709 = vmul.f32 %v707, %v204
  %v710 = vmul.f32 %v708, %v205
  %s711 = scalar_lea.vmem [#allocation2], 48
  %v712 = vld [vmem:[%s711] sm:$0xff]
  %v713 = vld [vmem:[%s711 + $0x8] sm:$0xff]
  %v715 = vsel %vm210, %v709, 0
  %v718 = vsel %vm210, %v710, 0
  %720 = vmatpush.msra.mxu0 0.0
  %721 = vmatpush.msra.mxu0 0.0
  %722 = vmatpush.msra.mxu0 0.0
  %723 = vmatpush.msra.mxu0 0.0
  %724 = vmatpush.msra.mxu0 0.0
  %725 = vmatpush.msra.mxu0 0.0
  %726 = vmatpush.msra.mxu0 0.0
  %727 = vmatpush.msra.mxu0 0.0
  %728 = vmatpush.msra.mxu0 %v189
  %729 = vmatpush.msra.mxu0 %v188
  %730 = vmatpush.msra.mxu0 %v187
  %731 = vmatpush.msra.mxu0 %v186
  %732 = vmatpush.msra.mxu0 %v185
  %733 = vmatpush.msra.mxu0 %v184
  %734 = vmatpush.msra.mxu0 %v183
  %735 = vmatpush.msra.mxu0 %v182
  %736 = vmatmul.f32.gmra.mxu0 %v715
  %v737 = vpop.f32.mrf.mxu0
  %v738 = vadd.f32 0.0, %v737
  %739 = vmatmul.f32.gmra.mxu0 %v718
  %v740 = vpop.f32.mrf.mxu0
  %v741 = vadd.f32 0.0, %v740
  %742 = vdwg.mxu0
  %v743 = vadd.f32 %v712, %v738
  %v744 = vadd.f32 %v713, %v741
  %v745 = vxor.u32 %v743, 2147483648
  %v746 = vxor.u32 %v744, 2147483648
  %v747 = vmul.f32 %v745, 1.442695
  %v748 = vpow.pop %v747
  %v749 = vmul.f32 %v746, 1.442695
  %v750 = vpow.pop %v749
  %v751 = vadd.f32 %v748, 1.0
  %v752 = vadd.f32 %v750, 1.0
  %v753 = vrcp.pop %v751
  %v754 = vmul.f32 %v751, %v753
  %v755 = vsub.f32 1.0, %v754
  %v756 = vmul.f32 %v753, %v755
  %v757 = vadd.f32 %v753, %v756
  %vm758 = vweird.f32 %v751
  %vm759 = vweird.f32 %v753
  %vm760 = vmor %vm758, %vm759
  %v761 = vsel %vm760, %v753, %v757
  %v762 = vand.u32 2147483647, %v751
  %vm763 = vcmp.eq.f32.partialorder %v762, 8.507059e+37
  %v764 = vand.u32 %v751, 2147483648
  %v765 = vor.u32 1.1754944e-38, %v764
  %v766 = vsel %vm763, %v765, %v761
  %v767 = vmul.f32 1.0, %v766
  %v768 = vrcp.pop %v752
  %v769 = vmul.f32 %v752, %v768
  %v770 = vsub.f32 1.0, %v769
  %v771 = vmul.f32 %v768, %v770
  %v772 = vadd.f32 %v768, %v771
  %vm773 = vweird.f32 %v752
  %vm774 = vweird.f32 %v768
  %vm775 = vmor %vm773, %vm774
  %v776 = vsel %vm775, %v768, %v772
  %v777 = vand.u32 2147483647, %v752
  %vm778 = vcmp.eq.f32.partialorder %v777, 8.507059e+37
  %v779 = vand.u32 %v752, 2147483648
  %v780 = vor.u32 1.1754944e-38, %v779
  %v781 = vsel %vm778, %v780, %v776
  %v782 = vmul.f32 1.0, %v781
  %v783 = vtanh.pop %v743
  %v784 = vtanh.pop %v744
  %787 = vrot.lane.b32.xlu0 %v687, 32
  %v788 = vpop.permute.xlu0 %787
  %789 = vrot.lane.b32.xlu0 %v688, 32
  %v790 = vpop.permute.xlu0 %789
  %v793 = vmul.f32 %v767, %v788
  %v794 = vmul.f32 %v782, %v790
  %797 = vrot.lane.b32.xlu0 %v783, 64
  %v798 = vpop.permute.xlu0 %797
  %799 = vrot.lane.b32.xlu0 %v784, 64
  %v800 = vpop.permute.xlu0 %799
  %v803 = vmul.f32 %v767, %v798
  %v804 = vmul.f32 %v782, %v800
  %807 = vrot.lane.b32.xlu0 %v803, 32
  %v808 = vpop.permute.xlu0 %807
  %809 = vrot.lane.b32.xlu0 %v804, 32
  %v810 = vpop.permute.xlu0 %809
  %v813 = vadd.f32 %v793, %v808
  %v814 = vadd.f32 %v794, %v810
  %v815 = vtanh.pop %v813
  %v816 = vtanh.pop %v814
  %819 = vrot.lane.b32.xlu0 %v815, 64
  %v820 = vpop.permute.xlu0 %819
  %821 = vrot.lane.b32.xlu0 %v816, 64
  %v822 = vpop.permute.xlu0 %821
  %v825 = vmul.f32 %v767, %v820
  %v826 = vmul.f32 %v782, %v822
  %vm827 = vcmp.le.s32.totalorder %v190, 3
  %vm828 = vcmp.le.s32.totalorder %v191, 3
  %vm829 = vcmp.gt.s32.totalorder %v190, 3
  %vm830 = vcmp.gt.s32.totalorder %v191, 3
  %v831 = vsel %vm829, 1, 0
  %v832 = vsel %vm830, 1, 0
  %833 = vrot.lane.b32.xlu0 %v831, 96
  %v834 = vpop.permute.xlu0 %833
  %835 = vrot.lane.b32.xlu0 %v832, 96
  %v836 = vpop.permute.xlu0 %835
  %vm837 = vcmp.ne.s32.totalorder %v834, 0
  %vm838 = vcmp.ne.s32.totalorder %v836, 0
  %vm839 = vmand %vm827, %vm837
  %vm840 = vmand %vm828, %vm838
  %843 = vrot.lane.b32.xlu0 %v825, 32
  %v844 = vpop.permute.xlu0 %843
  %845 = vrot.lane.b32.xlu0 %v826, 32
  %v846 = vpop.permute.xlu0 %845
  %v849 = vsel %vm839, %v844, %v677
  %v850 = vsel %vm840, %v846, %v678
  %853 = vrot.lane.b32.xlu0 %v813, 96
  %v854 = vpop.permute.xlu0 %853
  %855 = vrot.lane.b32.xlu0 %v814, 96
  %v856 = vpop.permute.xlu0 %855
  %v859 = vsel %vm839, %v854, %v687
  %v860 = vsel %vm840, %v856, %v688
  %v861 = vsel %vm839, %v844, 0.0
  %v862 = vsel %vm840, %v846, 0.0
  %s863 = scalar_lea.vmem [#allocation3], 24
  %864 = vst.msk [vmem:[%s863] sm:$0xff] %vm350, %v861
  %866 = vrot.lane.b32.xlu0 %v862, 32
  %v867 = vpop.permute.xlu0 %866
  %s869 = scalar_lea.vmem [#allocation3], 32
  %870 = vst.msk [vmem:[%s869] sm:$0xff] %vm357, %v867
  %873 = vrot.lane.b32.xlu0 %v849, 32
  %v874 = vpop.permute.xlu0 %873
  %875 = vrot.lane.b32.xlu0 %v850, 32
  %v876 = vpop.permute.xlu0 %875
  %v879 = vsel %vm350, %v849, %v874
  %v880 = vsel %vm350, %v850, %v876
  %v881 = vmul.f32 %v879, %v204
  %v882 = vmul.f32 %v880, %v205
  %s883 = scalar_lea.vmem [#allocation2], 64
  %v884 = vld [vmem:[%s883] sm:$0xff]
  %v885 = vld [vmem:[%s883 + $0x8] sm:$0xff]
  %v887 = vsel %vm210, %v881, 0
  %v890 = vsel %vm210, %v882, 0
  %892 = vmatpush.msra.mxu0 0.0
  %893 = vmatpush.msra.mxu0 0.0
  %894 = vmatpush.msra.mxu0 0.0
  %895 = vmatpush.msra.mxu0 0.0
  %896 = vmatpush.msra.mxu0 0.0
  %897 = vmatpush.msra.mxu0 0.0
  %898 = vmatpush.msra.mxu0 0.0
  %899 = vmatpush.msra.mxu0 0.0
  %900 = vmatpush.msra.mxu0 %v189
  %901 = vmatpush.msra.mxu0 %v188
  %902 = vmatpush.msra.mxu0 %v187
  %903 = vmatpush.msra.mxu0 %v186
  %904 = vmatpush.msra.mxu0 %v185
  %905 = vmatpush.msra.mxu0 %v184
  %906 = vmatpush.msra.mxu0 %v183
  %907 = vmatpush.msra.mxu0 %v182
  %908 = vmatmul.f32.gmra.mxu0 %v887
  %v909 = vpop.f32.mrf.mxu0
  %v910 = vadd.f32 0.0, %v909
  %911 = vmatmul.f32.gmra.mxu0 %v890
  %v912 = vpop.f32.mrf.mxu0
  %v913 = vadd.f32 0.0, %v912
  %914 = vdwg.mxu0
  %v915 = vadd.f32 %v884, %v910
  %v916 = vadd.f32 %v885, %v913
  %v917 = vxor.u32 %v915, 2147483648
  %v918 = vxor.u32 %v916, 2147483648
  %v919 = vmul.f32 %v917, 1.442695
  %v920 = vpow.pop %v919
  %v921 = vmul.f32 %v918, 1.442695
  %v922 = vpow.pop %v921
  %v923 = vadd.f32 %v920, 1.0
  %v924 = vadd.f32 %v922, 1.0
  %v925 = vrcp.pop %v923
  %v926 = vmul.f32 %v923, %v925
  %v927 = vsub.f32 1.0, %v926
  %v928 = vmul.f32 %v925, %v927
  %v929 = vadd.f32 %v925, %v928
  %vm930 = vweird.f32 %v923
  %vm931 = vweird.f32 %v925
  %vm932 = vmor %vm930, %vm931
  %v933 = vsel %vm932, %v925, %v929
  %v934 = vand.u32 2147483647, %v923
  %vm935 = vcmp.eq.f32.partialorder %v934, 8.507059e+37
  %v936 = vand.u32 %v923, 2147483648
  %v937 = vor.u32 1.1754944e-38, %v936
  %v938 = vsel %vm935, %v937, %v933
  %v939 = vmul.f32 1.0, %v938
  %v940 = vrcp.pop %v924
  %v941 = vmul.f32 %v924, %v940
  %v942 = vsub.f32 1.0, %v941
  %v943 = vmul.f32 %v940, %v942
  %v944 = vadd.f32 %v940, %v943
  %vm945 = vweird.f32 %v924
  %vm946 = vweird.f32 %v940
  %vm947 = vmor %vm945, %vm946
  %v948 = vsel %vm947, %v940, %v944
  %v949 = vand.u32 2147483647, %v924
  %vm950 = vcmp.eq.f32.partialorder %v949, 8.507059e+37
  %v951 = vand.u32 %v924, 2147483648
  %v952 = vor.u32 1.1754944e-38, %v951
  %v953 = vsel %vm950, %v952, %v948
  %v954 = vmul.f32 1.0, %v953
  %v955 = vtanh.pop %v915
  %v956 = vtanh.pop %v916
  %959 = vrot.lane.b32.xlu0 %v859, 32
  %v960 = vpop.permute.xlu0 %959
  %961 = vrot.lane.b32.xlu0 %v860, 32
  %v962 = vpop.permute.xlu0 %961
  %v965 = vmul.f32 %v939, %v960
  %v966 = vmul.f32 %v954, %v962
  %969 = vrot.lane.b32.xlu0 %v955, 64
  %v970 = vpop.permute.xlu0 %969
  %971 = vrot.lane.b32.xlu0 %v956, 64
  %v972 = vpop.permute.xlu0 %971
  %v975 = vmul.f32 %v939, %v970
  %v976 = vmul.f32 %v954, %v972
  %979 = vrot.lane.b32.xlu0 %v975, 32
  %v980 = vpop.permute.xlu0 %979
  %981 = vrot.lane.b32.xlu0 %v976, 32
  %v982 = vpop.permute.xlu0 %981
  %v985 = vadd.f32 %v965, %v980
  %v986 = vadd.f32 %v966, %v982
  %v987 = vtanh.pop %v985
  %v988 = vtanh.pop %v986
  %991 = vrot.lane.b32.xlu0 %v987, 64
  %v992 = vpop.permute.xlu0 %991
  %993 = vrot.lane.b32.xlu0 %v988, 64
  %v994 = vpop.permute.xlu0 %993
  %v997 = vmul.f32 %v939, %v992
  %v998 = vmul.f32 %v954, %v994
  %vm999 = vcmp.le.s32.totalorder %v190, 4
  %vm1000 = vcmp.le.s32.totalorder %v191, 4
  %vm1001 = vcmp.gt.s32.totalorder %v190, 4
  %vm1002 = vcmp.gt.s32.totalorder %v191, 4
  %v1003 = vsel %vm1001, 1, 0
  %v1004 = vsel %vm1002, 1, 0
  %1005 = vrot.lane.b32.xlu0 %v1003, 96
  %v1006 = vpop.permute.xlu0 %1005
  %1007 = vrot.lane.b32.xlu0 %v1004, 96
  %v1008 = vpop.permute.xlu0 %1007
  %vm1009 = vcmp.ne.s32.totalorder %v1006, 0
  %vm1010 = vcmp.ne.s32.totalorder %v1008, 0
  %vm1011 = vmand %vm999, %vm1009
  %vm1012 = vmand %vm1000, %vm1010
  %1015 = vrot.lane.b32.xlu0 %v997, 32
  %v1016 = vpop.permute.xlu0 %1015
  %1017 = vrot.lane.b32.xlu0 %v998, 32
  %v1018 = vpop.permute.xlu0 %1017
  %v1021 = vsel %vm1011, %v1016, %v849
  %v1022 = vsel %vm1012, %v1018, %v850
  %1025 = vrot.lane.b32.xlu0 %v985, 96
  %v1026 = vpop.permute.xlu0 %1025
  %1027 = vrot.lane.b32.xlu0 %v986, 96
  %v1028 = vpop.permute.xlu0 %1027
  %v1031 = vsel %vm1011, %v1026, %v859
  %v1032 = vsel %vm1012, %v1028, %v860
  %v1033 = vsel %vm1011, %v1016, 0.0
  %v1034 = vsel %vm1012, %v1018, 0.0
  %1035 = vst.msk [vmem:[%s869] sm:$0xff] %vm350, %v1033
  %1037 = vrot.lane.b32.xlu0 %v1034, 32
  %v1038 = vpop.permute.xlu0 %1037
  %1040 = vst.msk [vmem:[%s863] sm:$0xff] %vm357, %v1038
  %1043 = vrot.lane.b32.xlu0 %v1021, 32
  %v1044 = vpop.permute.xlu0 %1043
  %1045 = vrot.lane.b32.xlu0 %v1022, 32
  %v1046 = vpop.permute.xlu0 %1045
  %v1049 = vsel %vm350, %v1021, %v1044
  %v1050 = vsel %vm350, %v1022, %v1046
  %v1051 = vmul.f32 %v1049, %v204
  %v1052 = vmul.f32 %v1050, %v205
  %s1053 = scalar_lea.vmem [#allocation2], 80
  %v1054 = vld [vmem:[%s1053] sm:$0xff]
  %v1055 = vld [vmem:[%s1053 + $0x8] sm:$0xff]
  %v1057 = vsel %vm210, %v1051, 0
  %v1060 = vsel %vm210, %v1052, 0
  %1062 = vmatpush.msra.mxu0 0.0
  %1063 = vmatpush.msra.mxu0 0.0
  %1064 = vmatpush.msra.mxu0 0.0
  %1065 = vmatpush.msra.mxu0 0.0
  %1066 = vmatpush.msra.mxu0 0.0
  %1067 = vmatpush.msra.mxu0 0.0
  %1068 = vmatpush.msra.mxu0 0.0
  %1069 = vmatpush.msra.mxu0 0.0
  %1070 = vmatpush.msra.mxu0 %v189
  %1071 = vmatpush.msra.mxu0 %v188
  %1072 = vmatpush.msra.mxu0 %v187
  %1073 = vmatpush.msra.mxu0 %v186
  %1074 = vmatpush.msra.mxu0 %v185
  %1075 = vmatpush.msra.mxu0 %v184
  %1076 = vmatpush.msra.mxu0 %v183
  %1077 = vmatpush.msra.mxu0 %v182
  %1078 = vmatmul.f32.gmra.mxu0 %v1057
  %v1079 = vpop.f32.mrf.mxu0
  %v1080 = vadd.f32 0.0, %v1079
  %1081 = vmatmul.f32.gmra.mxu0 %v1060
  %v1082 = vpop.f32.mrf.mxu0
  %v1083 = vadd.f32 0.0, %v1082
  %1084 = vdwg.mxu0
  %v1085 = vadd.f32 %v1054, %v1080
  %v1086 = vadd.f32 %v1055, %v1083
  %v1087 = vxor.u32 %v1085, 2147483648
  %v1088 = vxor.u32 %v1086, 2147483648
  %v1089 = vmul.f32 %v1087, 1.442695
  %v1090 = vpow.pop %v1089
  %v1091 = vmul.f32 %v1088, 1.442695
  %v1092 = vpow.pop %v1091
  %v1093 = vadd.f32 %v1090, 1.0
  %v1094 = vadd.f32 %v1092, 1.0
  %v1095 = vrcp.pop %v1093
  %v1096 = vmul.f32 %v1093, %v1095
  %v1097 = vsub.f32 1.0, %v1096
  %v1098 = vmul.f32 %v1095, %v1097
  %v1099 = vadd.f32 %v1095, %v1098
  %vm1100 = vweird.f32 %v1093
  %vm1101 = vweird.f32 %v1095
  %vm1102 = vmor %vm1100, %vm1101
  %v1103 = vsel %vm1102, %v1095, %v1099
  %v1104 = vand.u32 2147483647, %v1093
  %vm1105 = vcmp.eq.f32.partialorder %v1104, 8.507059e+37
  %v1106 = vand.u32 %v1093, 2147483648
  %v1107 = vor.u32 1.1754944e-38, %v1106
  %v1108 = vsel %vm1105, %v1107, %v1103
  %v1109 = vmul.f32 1.0, %v1108
  %v1110 = vrcp.pop %v1094
  %v1111 = vmul.f32 %v1094, %v1110
  %v1112 = vsub.f32 1.0, %v1111
  %v1113 = vmul.f32 %v1110, %v1112
  %v1114 = vadd.f32 %v1110, %v1113
  %vm1115 = vweird.f32 %v1094
  %vm1116 = vweird.f32 %v1110
  %vm1117 = vmor %vm1115, %vm1116
  %v1118 = vsel %vm1117, %v1110, %v1114
  %v1119 = vand.u32 2147483647, %v1094
  %vm1120 = vcmp.eq.f32.partialorder %v1119, 8.507059e+37
  %v1121 = vand.u32 %v1094, 2147483648
  %v1122 = vor.u32 1.1754944e-38, %v1121
  %v1123 = vsel %vm1120, %v1122, %v1118
  %v1124 = vmul.f32 1.0, %v1123
  %v1125 = vtanh.pop %v1085
  %v1126 = vtanh.pop %v1086
  %1129 = vrot.lane.b32.xlu0 %v1031, 32
  %v1130 = vpop.permute.xlu0 %1129
  %1131 = vrot.lane.b32.xlu0 %v1032, 32
  %v1132 = vpop.permute.xlu0 %1131
  %v1135 = vmul.f32 %v1109, %v1130
  %v1136 = vmul.f32 %v1124, %v1132
  %1139 = vrot.lane.b32.xlu0 %v1125, 64
  %v1140 = vpop.permute.xlu0 %1139
  %1141 = vrot.lane.b32.xlu0 %v1126, 64
  %v1142 = vpop.permute.xlu0 %1141
  %v1145 = vmul.f32 %v1109, %v1140
  %v1146 = vmul.f32 %v1124, %v1142
  %1149 = vrot.lane.b32.xlu0 %v1145, 32
  %v1150 = vpop.permute.xlu0 %1149
  %1151 = vrot.lane.b32.xlu0 %v1146, 32
  %v1152 = vpop.permute.xlu0 %1151
  %v1155 = vadd.f32 %v1135, %v1150
  %v1156 = vadd.f32 %v1136, %v1152
  %v1157 = vtanh.pop %v1155
  %v1158 = vtanh.pop %v1156
  %1161 = vrot.lane.b32.xlu0 %v1157, 64
  %v1162 = vpop.permute.xlu0 %1161
  %1163 = vrot.lane.b32.xlu0 %v1158, 64
  %v1164 = vpop.permute.xlu0 %1163
  %v1167 = vmul.f32 %v1109, %v1162
  %v1168 = vmul.f32 %v1124, %v1164
  %vm1169 = vcmp.le.s32.totalorder %v190, 5
  %vm1170 = vcmp.le.s32.totalorder %v191, 5
  %vm1171 = vcmp.gt.s32.totalorder %v190, 5
  %vm1172 = vcmp.gt.s32.totalorder %v191, 5
  %v1173 = vsel %vm1171, 1, 0
  %v1174 = vsel %vm1172, 1, 0
  %1175 = vrot.lane.b32.xlu0 %v1173, 96
  %v1176 = vpop.permute.xlu0 %1175
  %1177 = vrot.lane.b32.xlu0 %v1174, 96
  %v1178 = vpop.permute.xlu0 %1177
  %vm1179 = vcmp.ne.s32.totalorder %v1176, 0
  %vm1180 = vcmp.ne.s32.totalorder %v1178, 0
  %vm1181 = vmand %vm1169, %vm1179
  %vm1182 = vmand %vm1170, %vm1180
  %1185 = vrot.lane.b32.xlu0 %v1167, 32
  %v1186 = vpop.permute.xlu0 %1185
  %1187 = vrot.lane.b32.xlu0 %v1168, 32
  %v1188 = vpop.permute.xlu0 %1187
  %v1191 = vsel %vm1181, %v1186, %v1021
  %v1192 = vsel %vm1182, %v1188, %v1022
  %1195 = vrot.lane.b32.xlu0 %v1155, 96
  %v1196 = vpop.permute.xlu0 %1195
  %1197 = vrot.lane.b32.xlu0 %v1156, 96
  %v1198 = vpop.permute.xlu0 %1197
  %v1201 = vsel %vm1181, %v1196, %v1031
  %v1202 = vsel %vm1182, %v1198, %v1032
  %v1203 = vsel %vm1181, %v1186, 0.0
  %v1204 = vsel %vm1182, %v1188, 0.0
  %1205 = vst.msk [vmem:[%s697] sm:$0xff] %vm350, %v1203
  %1207 = vrot.lane.b32.xlu0 %v1204, 32
  %v1208 = vpop.permute.xlu0 %1207
  %1210 = vst.msk [vmem:[%s691] sm:$0xff] %vm357, %v1208
  %1213 = vrot.lane.b32.xlu0 %v1191, 32
  %v1214 = vpop.permute.xlu0 %1213
  %1215 = vrot.lane.b32.xlu0 %v1192, 32
  %v1216 = vpop.permute.xlu0 %1215
  %v1219 = vsel %vm350, %v1191, %v1214
  %v1220 = vsel %vm350, %v1192, %v1216
  %v1221 = vmul.f32 %v1219, %v204
  %v1222 = vmul.f32 %v1220, %v205
  %s1223 = scalar_lea.vmem [#allocation2], 96
  %v1224 = vld [vmem:[%s1223] sm:$0xff]
  %v1225 = vld [vmem:[%s1223 + $0x8] sm:$0xff]
  %v1227 = vsel %vm210, %v1221, 0
  %v1230 = vsel %vm210, %v1222, 0
  %1232 = vmatpush.msra.mxu0 0.0
  %1233 = vmatpush.msra.mxu0 0.0
  %1234 = vmatpush.msra.mxu0 0.0
  %1235 = vmatpush.msra.mxu0 0.0
  %1236 = vmatpush.msra.mxu0 0.0
  %1237 = vmatpush.msra.mxu0 0.0
  %1238 = vmatpush.msra.mxu0 0.0
  %1239 = vmatpush.msra.mxu0 0.0
  %1240 = vmatpush.msra.mxu0 %v189
  %1241 = vmatpush.msra.mxu0 %v188
  %1242 = vmatpush.msra.mxu0 %v187
  %1243 = vmatpush.msra.mxu0 %v186
  %1244 = vmatpush.msra.mxu0 %v185
  %1245 = vmatpush.msra.mxu0 %v184
  %1246 = vmatpush.msra.mxu0 %v183
  %1247 = vmatpush.msra.mxu0 %v182
  %1248 = vmatmul.f32.gmra.mxu0 %v1227
  %v1249 = vpop.f32.mrf.mxu0
  %v1250 = vadd.f32 0.0, %v1249
  %1251 = vmatmul.f32.gmra.mxu0 %v1230
  %v1252 = vpop.f32.mrf.mxu0
  %v1253 = vadd.f32 0.0, %v1252
  %1254 = vdwg.mxu0
  %v1255 = vadd.f32 %v1224, %v1250
  %v1256 = vadd.f32 %v1225, %v1253
  %v1257 = vxor.u32 %v1255, 2147483648
  %v1258 = vxor.u32 %v1256, 2147483648
  %v1259 = vmul.f32 %v1257, 1.442695
  %v1260 = vpow.pop %v1259
  %v1261 = vmul.f32 %v1258, 1.442695
  %v1262 = vpow.pop %v1261
  %v1263 = vadd.f32 %v1260, 1.0
  %v1264 = vadd.f32 %v1262, 1.0
  %v1265 = vrcp.pop %v1263
  %v1266 = vmul.f32 %v1263, %v1265
  %v1267 = vsub.f32 1.0, %v1266
  %v1268 = vmul.f32 %v1265, %v1267
  %v1269 = vadd.f32 %v1265, %v1268
  %vm1270 = vweird.f32 %v1263
  %vm1271 = vweird.f32 %v1265
  %vm1272 = vmor %vm1270, %vm1271
  %v1273 = vsel %vm1272, %v1265, %v1269
  %v1274 = vand.u32 2147483647, %v1263
  %vm1275 = vcmp.eq.f32.partialorder %v1274, 8.507059e+37
  %v1276 = vand.u32 %v1263, 2147483648
  %v1277 = vor.u32 1.1754944e-38, %v1276
  %v1278 = vsel %vm1275, %v1277, %v1273
  %v1279 = vmul.f32 1.0, %v1278
  %v1280 = vrcp.pop %v1264
  %v1281 = vmul.f32 %v1264, %v1280
  %v1282 = vsub.f32 1.0, %v1281
  %v1283 = vmul.f32 %v1280, %v1282
  %v1284 = vadd.f32 %v1280, %v1283
  %vm1285 = vweird.f32 %v1264
  %vm1286 = vweird.f32 %v1280
  %vm1287 = vmor %vm1285, %vm1286
  %v1288 = vsel %vm1287, %v1280, %v1284
  %v1289 = vand.u32 2147483647, %v1264
  %vm1290 = vcmp.eq.f32.partialorder %v1289, 8.507059e+37
  %v1291 = vand.u32 %v1264, 2147483648
  %v1292 = vor.u32 1.1754944e-38, %v1291
  %v1293 = vsel %vm1290, %v1292, %v1288
  %v1294 = vmul.f32 1.0, %v1293
  %v1295 = vtanh.pop %v1255
  %v1296 = vtanh.pop %v1256
  %1299 = vrot.lane.b32.xlu0 %v1201, 32
  %v1300 = vpop.permute.xlu0 %1299
  %1301 = vrot.lane.b32.xlu0 %v1202, 32
  %v1302 = vpop.permute.xlu0 %1301
  %v1305 = vmul.f32 %v1279, %v1300
  %v1306 = vmul.f32 %v1294, %v1302
  %1309 = vrot.lane.b32.xlu0 %v1295, 64
  %v1310 = vpop.permute.xlu0 %1309
  %1311 = vrot.lane.b32.xlu0 %v1296, 64
  %v1312 = vpop.permute.xlu0 %1311
  %v1315 = vmul.f32 %v1279, %v1310
  %v1316 = vmul.f32 %v1294, %v1312
  %1319 = vrot.lane.b32.xlu0 %v1315, 32
  %v1320 = vpop.permute.xlu0 %1319
  %1321 = vrot.lane.b32.xlu0 %v1316, 32
  %v1322 = vpop.permute.xlu0 %1321
  %v1325 = vadd.f32 %v1305, %v1320
  %v1326 = vadd.f32 %v1306, %v1322
  %v1327 = vtanh.pop %v1325
  %v1328 = vtanh.pop %v1326
  %1331 = vrot.lane.b32.xlu0 %v1327, 64
  %v1332 = vpop.permute.xlu0 %1331
  %1333 = vrot.lane.b32.xlu0 %v1328, 64
  %v1334 = vpop.permute.xlu0 %1333
  %v1337 = vmul.f32 %v1279, %v1332
  %v1338 = vmul.f32 %v1294, %v1334
  %vm1339 = vcmp.le.s32.totalorder %v190, 6
  %vm1340 = vcmp.le.s32.totalorder %v191, 6
  %vm1341 = vcmp.gt.s32.totalorder %v190, 6
  %vm1342 = vcmp.gt.s32.totalorder %v191, 6
  %v1343 = vsel %vm1341, 1, 0
  %v1344 = vsel %vm1342, 1, 0
  %1345 = vrot.lane.b32.xlu0 %v1343, 96
  %v1346 = vpop.permute.xlu0 %1345
  %1347 = vrot.lane.b32.xlu0 %v1344, 96
  %v1348 = vpop.permute.xlu0 %1347
  %vm1349 = vcmp.ne.s32.totalorder %v1346, 0
  %vm1350 = vcmp.ne.s32.totalorder %v1348, 0
  %vm1351 = vmand %vm1339, %vm1349
  %vm1352 = vmand %vm1340, %vm1350
  %1355 = vrot.lane.b32.xlu0 %v1337, 32
  %v1356 = vpop.permute.xlu0 %1355
  %1357 = vrot.lane.b32.xlu0 %v1338, 32
  %v1358 = vpop.permute.xlu0 %1357
  %v1361 = vsel %vm1351, %v1356, %v1191
  %v1362 = vsel %vm1352, %v1358, %v1192
  %1365 = vrot.lane.b32.xlu0 %v1325, 96
  %v1366 = vpop.permute.xlu0 %1365
  %1367 = vrot.lane.b32.xlu0 %v1326, 96
  %v1368 = vpop.permute.xlu0 %1367
  %v1371 = vsel %vm1351, %v1366, %v1201
  %v1372 = vsel %vm1352, %v1368, %v1202
  %v1373 = vsel %vm1351, %v1356, 0.0
  %v1374 = vsel %vm1352, %v1358, 0.0
  %1375 = vst.msk [vmem:[%s525] sm:$0xff] %vm350, %v1373
  %1377 = vrot.lane.b32.xlu0 %v1374, 32
  %v1378 = vpop.permute.xlu0 %1377
  %1380 = vst.msk [vmem:[%s519] sm:$0xff] %vm357, %v1378
  %1383 = vrot.lane.b32.xlu0 %v1361, 32
  %v1384 = vpop.permute.xlu0 %1383
  %1385 = vrot.lane.b32.xlu0 %v1362, 32
  %v1386 = vpop.permute.xlu0 %1385
  %v1389 = vsel %vm350, %v1361, %v1384
  %v1390 = vsel %vm350, %v1362, %v1386
  %v1391 = vmul.f32 %v1389, %v204
  %v1392 = vmul.f32 %v1390, %v205
  %s1393 = scalar_lea.vmem [#allocation2], 112
  %v1394 = vld [vmem:[%s1393] sm:$0xff]
  %v1395 = vld [vmem:[%s1393 + $0x8] sm:$0xff]
  %v1397 = vsel %vm210, %v1391, 0
  %v1400 = vsel %vm210, %v1392, 0
  %1402 = vmatpush.msra.mxu0 0.0
  %1403 = vmatpush.msra.mxu0 0.0
  %1404 = vmatpush.msra.mxu0 0.0
  %1405 = vmatpush.msra.mxu0 0.0
  %1406 = vmatpush.msra.mxu0 0.0
  %1407 = vmatpush.msra.mxu0 0.0
  %1408 = vmatpush.msra.mxu0 0.0
  %1409 = vmatpush.msra.mxu0 0.0
  %1410 = vmatpush.msra.mxu0 %v189
  %1411 = vmatpush.msra.mxu0 %v188
  %1412 = vmatpush.msra.mxu0 %v187
  %1413 = vmatpush.msra.mxu0 %v186
  %1414 = vmatpush.msra.mxu0 %v185
  %1415 = vmatpush.msra.mxu0 %v184
  %1416 = vmatpush.msra.mxu0 %v183
  %1417 = vmatpush.msra.mxu0 %v182
  %1418 = vmatmul.f32.gmra.mxu0 %v1397
  %v1419 = vpop.f32.mrf.mxu0
  %v1420 = vadd.f32 0.0, %v1419
  %1421 = vmatmul.f32.gmra.mxu0 %v1400
  %v1422 = vpop.f32.mrf.mxu0
  %v1423 = vadd.f32 0.0, %v1422
  %1424 = vdwg.mxu0
  %v1425 = vadd.f32 %v1394, %v1420
  %v1426 = vadd.f32 %v1395, %v1423
  %v1427 = vxor.u32 %v1425, 2147483648
  %v1428 = vxor.u32 %v1426, 2147483648
  %v1429 = vmul.f32 %v1427, 1.442695
  %v1430 = vpow.pop %v1429
  %v1431 = vmul.f32 %v1428, 1.442695
  %v1432 = vpow.pop %v1431
  %v1433 = vadd.f32 %v1430, 1.0
  %v1434 = vadd.f32 %v1432, 1.0
  %v1435 = vrcp.pop %v1433
  %v1436 = vmul.f32 %v1433, %v1435
  %v1437 = vsub.f32 1.0, %v1436
  %v1438 = vmul.f32 %v1435, %v1437
  %v1439 = vadd.f32 %v1435, %v1438
  %vm1440 = vweird.f32 %v1433
  %vm1441 = vweird.f32 %v1435
  %vm1442 = vmor %vm1440, %vm1441
  %v1443 = vsel %vm1442, %v1435, %v1439
  %v1444 = vand.u32 2147483647, %v1433
  %vm1445 = vcmp.eq.f32.partialorder %v1444, 8.507059e+37
  %v1446 = vand.u32 %v1433, 2147483648
  %v1447 = vor.u32 1.1754944e-38, %v1446
  %v1448 = vsel %vm1445, %v1447, %v1443
  %v1449 = vmul.f32 1.0, %v1448
  %v1450 = vrcp.pop %v1434
  %v1451 = vmul.f32 %v1434, %v1450
  %v1452 = vsub.f32 1.0, %v1451
  %v1453 = vmul.f32 %v1450, %v1452
  %v1454 = vadd.f32 %v1450, %v1453
  %vm1455 = vweird.f32 %v1434
  %vm1456 = vweird.f32 %v1450
  %vm1457 = vmor %vm1455, %vm1456
  %v1458 = vsel %vm1457, %v1450, %v1454
  %v1459 = vand.u32 2147483647, %v1434
  %vm1460 = vcmp.eq.f32.partialorder %v1459, 8.507059e+37
  %v1461 = vand.u32 %v1434, 2147483648
  %v1462 = vor.u32 1.1754944e-38, %v1461
  %v1463 = vsel %vm1460, %v1462, %v1458
  %v1464 = vmul.f32 1.0, %v1463
  %v1465 = vtanh.pop %v1425
  %v1466 = vtanh.pop %v1426
  %1469 = vrot.lane.b32.xlu0 %v1371, 32
  %v1470 = vpop.permute.xlu0 %1469
  %1471 = vrot.lane.b32.xlu0 %v1372, 32
  %v1472 = vpop.permute.xlu0 %1471
  %v1475 = vmul.f32 %v1449, %v1470
  %v1476 = vmul.f32 %v1464, %v1472
  %1479 = vrot.lane.b32.xlu0 %v1465, 64
  %v1480 = vpop.permute.xlu0 %1479
  %1481 = vrot.lane.b32.xlu0 %v1466, 64
  %v1482 = vpop.permute.xlu0 %1481
  %v1485 = vmul.f32 %v1449, %v1480
  %v1486 = vmul.f32 %v1464, %v1482
  %1489 = vrot.lane.b32.xlu0 %v1485, 32
  %v1490 = vpop.permute.xlu0 %1489
  %1491 = vrot.lane.b32.xlu0 %v1486, 32
  %v1492 = vpop.permute.xlu0 %1491
  %v1495 = vadd.f32 %v1475, %v1490
  %v1496 = vadd.f32 %v1476, %v1492
  %v1497 = vtanh.pop %v1495
  %v1498 = vtanh.pop %v1496
  %1501 = vrot.lane.b32.xlu0 %v1497, 64
  %v1502 = vpop.permute.xlu0 %1501
  %1503 = vrot.lane.b32.xlu0 %v1498, 64
  %v1504 = vpop.permute.xlu0 %1503
  %v1507 = vmul.f32 %v1449, %v1502
  %v1508 = vmul.f32 %v1464, %v1504
  %vm1509 = vcmp.le.s32.totalorder %v190, 7
  %vm1510 = vcmp.le.s32.totalorder %v191, 7
  %vm1511 = vcmp.gt.s32.totalorder %v190, 7
  %vm1512 = vcmp.gt.s32.totalorder %v191, 7
  %v1513 = vsel %vm1511, 1, 0
  %v1514 = vsel %vm1512, 1, 0
  %1515 = vrot.lane.b32.xlu0 %v1513, 96
  %v1516 = vpop.permute.xlu0 %1515
  %1517 = vrot.lane.b32.xlu0 %v1514, 96
  %v1518 = vpop.permute.xlu0 %1517
  %vm1519 = vcmp.ne.s32.totalorder %v1516, 0
  %vm1520 = vcmp.ne.s32.totalorder %v1518, 0
  %vm1521 = vmand %vm1509, %vm1519
  %vm1522 = vmand %vm1510, %vm1520
  %1525 = vrot.lane.b32.xlu0 %v1507, 32
  %v1526 = vpop.permute.xlu0 %1525
  %1527 = vrot.lane.b32.xlu0 %v1508, 32
  %v1528 = vpop.permute.xlu0 %1527
  %v1531 = vsel %vm1521, %v1526, 0.0
  %v1532 = vsel %vm1522, %v1528, 0.0
  %1533 = vst.msk [vmem:[%s356] sm:$0xff] %vm350, %v1531
  %1535 = vrot.lane.b32.xlu0 %v1532, 32
  %v1536 = vpop.permute.xlu0 %1535
  %1538 = vst.msk [vmem:[#allocation3] sm:$0xff] %vm357, %v1536
  %v1539 = vld [vmem:[#allocation3] sm:$0xff]
  %v1540 = vld [vmem:[#allocation3 + $0x8] sm:$0xff]
  %v1541 = vld [vmem:[#allocation3 + $0x10] sm:$0xff]
  %v1542 = vld [vmem:[#allocation3 + $0x18] sm:$0xff]
  %v1543 = vld [vmem:[#allocation3 + $0x20] sm:$0xff]
  %v1544 = vld [vmem:[#allocation3 + $0x28] sm:$0xff]
  %v1545 = vld [vmem:[#allocation3 + $0x30] sm:$0xff]
  %v1546 = vld [vmem:[#allocation3 + $0x38] sm:$0xff]
  %v1547 = vld [vmem:[%s4] sm:$0xff]
  %v1548 = vld [vmem:[%s4 + $0x8] sm:$0xff]
  %v1549 = vld [vmem:[%s4 + $0x10] sm:$0xff]
  %v1550 = vld [vmem:[%s4 + $0x18] sm:$0xff]
  %v1551 = vld [vmem:[%s4 + $0x20] sm:$0xff]
  %v1552 = vld [vmem:[%s4 + $0x28] sm:$0xff]
  %v1553 = vld [vmem:[%s4 + $0x30] sm:$0xff]
  %v1554 = vld [vmem:[%s4 + $0x38] sm:$0xff]
  %v1555 = vld [vmem:[%s5] sm:$0x1]
  %v1557 = vperm.slane %v1555, 0
  %v1560 = vsel %vm210, %v1539, 0
  %v1563 = vsel %vm210, %v1540, 0
  %v1566 = vsel %vm210, %v1541, 0
  %v1569 = vsel %vm210, %v1542, 0
  %v1572 = vsel %vm210, %v1543, 0
  %v1575 = vsel %vm210, %v1544, 0
  %v1578 = vsel %vm210, %v1545, 0
  %v1581 = vsel %vm210, %v1546, 0
  %1583 = vmatpush.msra.mxu0 0.0
  %1584 = vmatpush.msra.mxu0 0.0
  %1585 = vmatpush.msra.mxu0 0.0
  %1586 = vmatpush.msra.mxu0 0.0
  %1587 = vmatpush.msra.mxu0 0.0
  %1588 = vmatpush.msra.mxu0 0.0
  %1589 = vmatpush.msra.mxu0 0.0
  %1590 = vmatpush.msra.mxu0 0.0
  %1591 = vmatpush.msra.mxu0 %v1554
  %1592 = vmatpush.msra.mxu0 %v1553
  %1593 = vmatpush.msra.mxu0 %v1552
  %1594 = vmatpush.msra.mxu0 %v1551
  %1595 = vmatpush.msra.mxu0 %v1550
  %1596 = vmatpush.msra.mxu0 %v1549
  %1597 = vmatpush.msra.mxu0 %v1548
  %1598 = vmatpush.msra.mxu0 %v1547
  %1599 = vmatmul.f32.gmra.mxu0 %v1560
  %v1600 = vpop.f32.mrf.mxu0
  %v1601 = vadd.f32 %v1557, %v1600
  %1602 = vmatmul.f32.gmra.mxu0 %v1563
  %v1603 = vpop.f32.mrf.mxu0
  %v1604 = vadd.f32 %v1557, %v1603
  %1605 = vmatmul.f32.gmra.mxu0 %v1566
  %v1606 = vpop.f32.mrf.mxu0
  %v1607 = vadd.f32 %v1557, %v1606
  %1608 = vmatmul.f32.gmra.mxu0 %v1569
  %v1609 = vpop.f32.mrf.mxu0
  %v1610 = vadd.f32 %v1557, %v1609
  %1611 = vmatmul.f32.gmra.mxu0 %v1572
  %v1612 = vpop.f32.mrf.mxu0
  %v1613 = vadd.f32 %v1557, %v1612
  %1614 = vmatmul.f32.gmra.mxu0 %v1575
  %v1615 = vpop.f32.mrf.mxu0
  %v1616 = vadd.f32 %v1557, %v1615
  %1617 = vmatmul.f32.gmra.mxu0 %v1578
  %v1618 = vpop.f32.mrf.mxu0
  %v1619 = vadd.f32 %v1557, %v1618
  %1620 = vmatmul.f32.gmra.mxu0 %v1581
  %v1621 = vpop.f32.mrf.mxu0
  %v1622 = vadd.f32 %v1557, %v1621
  %1623 = vdwg.mxu0
  %vm1624 = vcmask 64512
  %1625 = vst.msk [vmem:[%s6] sm:$0xff] %vm1624, %v1601
  %1626 = vst.msk [vmem:[%s6 + $0x8] sm:$0xff] %vm1624, %v1604
  %1627 = vst.msk [vmem:[%s6 + $0x10] sm:$0xff] %vm1624, %v1607
  %1628 = vst.msk [vmem:[%s6 + $0x18] sm:$0xff] %vm1624, %v1610
  %1629 = vst.msk [vmem:[%s6 + $0x20] sm:$0xff] %vm1624, %v1613
  %1630 = vst.msk [vmem:[%s6 + $0x28] sm:$0xff] %vm1624, %v1616
  %1631 = vst.msk [vmem:[%s6 + $0x30] sm:$0xff] %vm1624, %v1619
  %1632 = vst.msk [vmem:[%s6 + $0x38] sm:$0xff] %vm1624, %v1622
  // Predicated region
  $region26: #{tpu_custom_call.1} parent=0 // pred_check
    _
  $region27: #{tpu_custom_call.1} parent=0 // pred_check_branch
    %1634 = sbr.rel (0) target = $region29
  $region28: #{tpu_custom_call.1} parent=0 // pred_region
    _
  $region29: #{tpu_custom_call.1} parent=0 // pred_fallthru
    _
  // Predicated region
  $region30: #{tpu_custom_call.1} parent=0 // pred_check
    _
  $region31: #{tpu_custom_call.1} parent=0 // pred_check_branch
    %1636 = sbr.rel (0) target = $region33
  $region32: #{tpu_custom_call.1} parent=0 // pred_region
    _
  $region33: #{tpu_custom_call.1} parent=0 // pred_fallthru
    _

</llo_original>
